<compile_context>
chip_gen: v7x
topology: tpu7x:2x2x1
jax: 0.10.0
libtpu: 0.0.40
codegen_flags: <defaults>
</compile_context>

<pallas_src>
import jax
import jax.numpy as jnp
from jax.experimental import pallas as pl
from jax.experimental.pallas import tpu as pltpu

EPS = 1e-5


# ------------------------------ in-kernel helpers ------------------------------
def _shift_tap(h, direction):
    """h: (N, C, Lo) with length on lanes.

    Returns t with t[..., l] = h[..., l + direction], zero at the sequence
    boundary (Conv1d padding=1).  Implemented as an XLU rotate + iota mask
    (no zero-concat relayout copies); only non-negative roll amounts are used.
    """
    n, c, lo = h.shape
    lane = jax.lax.broadcasted_iota(jnp.int32, (n, c, lo), 2)
    if direction == -1:                       # t[l] = h[l-1]
        rolled = pltpu.roll(h, 1, 2)
        return jnp.where(lane >= 1, rolled, 0.0)
    else:                                     # t[l] = h[l+1]
        rolled = pltpu.roll(h, lo - 1, 2)
        return jnp.where(lane < lo - 1, rolled, 0.0)


def _conv3_bn_relu(h, w, gb):
    """Conv1d(k=3, pad=1, no bias) + training-mode BatchNorm1d + ReLU.

    h : (N, C, Lo) f32, length on lanes.
    w : (3, C_next, C)   taps 0/1/2 = offsets -1/0/+1.
    gb: (2, C_next, 1)   row 0 = gamma, row 1 = beta.
    """
    n, c, lo = h.shape
    hm1 = _shift_tap(h, -1)                   # h[l-1]
    hp1 = _shift_tap(h, +1)                   # h[l+1]
    w0, w1, w2 = w[0], w[1], w[2]

    # Per-tap (C_next, C) @ (C, Lo) MXU matmuls, lane-dense output.
    # N is a tiny static batch here; for large N fold it into a grid axis.
    y = jnp.stack(
        [jnp.dot(w0, hm1[i], preferred_element_type=jnp.float32)
         + jnp.dot(w1, h[i], preferred_element_type=jnp.float32)
         + jnp.dot(w2, hp1[i], preferred_element_type=jnp.float32)
         for i in range(n)],
        axis=0)                               # (N, C_next, Lo)
    # Conv bias omitted on purpose: it cancels exactly under the BatchNorm below.

    # One-pass fused BatchNorm (biased batch stats over (N, Lo)) + affine + ReLU.
    cnt = float(n * lo)
    s1 = jnp.sum(jnp.sum(y, axis=2, keepdims=True), axis=0, keepdims=True)
    s2 = jnp.sum(jnp.sum(y * y, axis=2, keepdims=True), axis=0, keepdims=True)
    mean = s1 / cnt
    var = s2 / cnt - mean * mean
    scale = gb[0:1] * jax.lax.rsqrt(var + EPS)      # (1, C_next, 1), rsqrt -> EUP
    shift = gb[1:2] - mean * scale
    return jnp.maximum(y * scale + shift, 0.0)


def _upsample_double_conv_kernel(x_ref, ut_ref, w1_ref, gb1_ref, w2_ref, gb2_ref,
                                 o_ref):
    n = x_ref.shape[0]
    x = x_ref[...]                            # (N, C_in, L), length on lanes
    ut = ut_ref[...]                          # (L, 2L) align_corners interpolation

    # nn.Upsample(scale_factor=2, mode='linear', align_corners=True):
    # lane-dense (C_in, L) @ (L, 2L) matmul per batch element.
    xu = jnp.stack(
        [jnp.dot(x[i], ut, preferred_element_type=jnp.float32) for i in range(n)],
        axis=0)                               # (N, C_in, 2L)

    h = _conv3_bn_relu(xu, w1_ref[...], gb1_ref[...])
    h = _conv3_bn_relu(h, w2_ref[...], gb2_ref[...])
    o_ref[...] = h.astype(o_ref.dtype)


# --------------------------------- wrapper ---------------------------------
def _upsample_operator(l_in, scale=2):
    """(L, scale*L) operator: x(C,L) @ U == torch Upsample(scale, 'linear',
    align_corners=True) along L.  Tap indices/weights use exact integer math."""
    l_out = scale * l_in
    k = jnp.arange(l_out, dtype=jnp.int32)
    num = k * (l_in - 1)                       # pos = num / (l_out - 1), exact
    den = l_out - 1
    lo = num // den
    hi = jnp.minimum(lo + 1, l_in - 1)
    frac = (num - lo * den).astype(jnp.float32) / float(den)
    u = jnp.zeros((l_in, l_out), jnp.float32)
    u = u.at[lo, k].add(1.0 - frac)
    u = u.at[hi, k].add(frac)
    return u


def upsample_forward(x_ncl, params):
    """UpSample(in_ch, out_ch, mode='linear'): (N, C_in, L) -> (N, C_out, 2L)."""
    n, c_in, l = x_ncl.shape
    l_out = 2 * l
    c_mid = params["w1"].shape[2]
    c_out = params["w2"].shape[2]

    ut = _upsample_operator(l)                                   # (L, 2L)
    # conv weights -> (tap, C_out, C_in): each tap is a ready matmul LHS
    w1 = jnp.transpose(params["w1"], (0, 2, 1))
    w2 = jnp.transpose(params["w2"], (0, 2, 1))
    # pack BatchNorm affine params: one (2, C, 1) array per layer
    gb1 = jnp.stack([params["g1"], params["be1"]], axis=0)[:, :, None]
    gb2 = jnp.stack([params["g2"], params["be2"]], axis=0)[:, :, None]
    # conv biases b1/b2 are not passed: a per-channel constant shift is removed
    # exactly by the training-mode BatchNorm that follows each conv.

    flops = 2 * n * l_out * (c_in * l // 2 + 3 * c_in * c_mid + 3 * c_mid * c_out) * 2
    bytes_accessed = 4 * (x_ncl.size + ut.size + w1.size + w2.size
                          + gb1.size + gb2.size + n * c_out * l_out)
    vmem_limit = int(min(128 * 1024 * 1024,
                         max(4 * 1024 * 1024, 16 * bytes_accessed)))

    vmem = pl.BlockSpec(memory_space=pltpu.MemorySpace.VMEM)
    return pl.pallas_call(
        _upsample_double_conv_kernel,
        out_shape=jax.ShapeDtypeStruct((n, c_out, l_out), jnp.float32),
        in_specs=[vmem] * 6,
        out_specs=vmem,
        compiler_params=pltpu.CompilerParams(vmem_limit_bytes=vmem_limit),
        cost_estimate=pl.CostEstimate(flops=int(flops),
                                      transcendentals=int(c_mid + c_out),
                                      bytes_accessed=int(bytes_accessed)),
    )(x_ncl, ut, w1, gb1, w2, gb2)


# ----------------------------- pure-JAX reference -----------------------------
def _reference(x_ncl, params):
    ut = _upsample_operator(x_ncl.shape[-1])
    xu = jnp.einsum("ncl,lk->nck", x_ncl, ut)

    def conv3(h, w, b):                        # w: (3, C_in, C_out), with bias
        hp = jnp.pad(h, ((0, 0), (0, 0), (1, 1)))
        y = (jnp.einsum("ncl,co->nol", hp[:, :, :-2], w[0])
             + jnp.einsum("ncl,co->nol", hp[:, :, 1:-1], w[1])
             + jnp.einsum("ncl,co->nol", hp[:, :, 2:], w[2]))
        return y + b[None, :, None]

    def bn_relu(h, g, be):
        m = jnp.mean(h, axis=(0, 2), keepdims=True)
        v = jnp.mean(jnp.square(h - m), axis=(0, 2), keepdims=True)
        return jnp.maximum((h - m) / jnp.sqrt(v + EPS) * g[None, :, None]
                           + be[None, :, None], 0.0)

    h = bn_relu(conv3(xu, params["w1"], params["b1"]), params["g1"], params["be1"])
    h = bn_relu(conv3(h, params["w2"], params["b2"]), params["g2"], params["be2"])
    return h


if __name__ == "__main__":
    # UpSample(in_channels=4, out_channels=8, mode='linear')
    N, C_IN, L = 2, 4, 16
    C_MID, C_OUT = C_IN // 2, 8

    key = jax.random.PRNGKey(0)
    ks = jax.random.split(key, 9)
    params = {
        # conv weights: (tap, C_in, C_out); taps 0/1/2 = offsets -1/0/+1
        "w1": 0.1 * jax.random.normal(ks[0], (3, C_IN, C_MID), jnp.float32),
        "b1": 0.1 * jax.random.normal(ks[1], (C_MID,), jnp.float32),
        "g1": 1.0 + 0.1 * jax.random.normal(ks[2], (C_MID,), jnp.float32),
        "be1": 0.1 * jax.random.normal(ks[3], (C_MID,), jnp.float32),
        "w2": 0.1 * jax.random.normal(ks[4], (3, C_MID, C_OUT), jnp.float32),
        "b2": 0.1 * jax.random.normal(ks[5], (C_OUT,), jnp.float32),
        "g2": 1.0 + 0.1 * jax.random.normal(ks[6], (C_OUT,), jnp.float32),
        "be2": 0.1 * jax.random.normal(ks[7], (C_OUT,), jnp.float32),
    }
    x = jax.random.normal(ks[8], (N, C_IN, L), jnp.float32)

    y = jax.block_until_ready(upsample_forward(x, params))
    assert y.shape == (N, C_OUT, 2 * L), y.shape

    y_ref = _reference(x, params)   # reference includes conv bias (cancels in BN)
    err = float(jnp.max(jnp.abs(y - y_ref)))
    assert jnp.allclose(y, y_ref, atol=2e-4, rtol=2e-4), f"mismatch, max |err|={err}"

    print("KERNEL_OK")
</pallas_src>

<mosaic_0001>
module attributes {stable_mosaic.version = 11 : i64} {
  func.func @_upsample_double_conv_kernel(%arg0: memref<2x4x16xf32, #tpu.memory_space<vmem>>, %arg1: memref<16x32xf32, #tpu.memory_space<vmem>>, %arg2: memref<3x2x4xf32, #tpu.memory_space<vmem>>, %arg3: memref<2x2x1xf32, #tpu.memory_space<vmem>>, %arg4: memref<3x8x2xf32, #tpu.memory_space<vmem>>, %arg5: memref<2x8x1xf32, #tpu.memory_space<vmem>>, %arg6: memref<2x8x32xf32, #tpu.memory_space<vmem>>) attributes {dimension_semantics = [], scalar_prefetch = 0 : i64, scratch_operands = 0 : i64, tpu.core_type = #tpu.core_type<tc>} {
    %c0 = arith.constant 0 : index
    %c0_0 = arith.constant 0 : index
    %c0_1 = arith.constant 0 : index
    %0 = vector.load %arg0[%c0, %c0_0, %c0_1] : memref<2x4x16xf32, #tpu.memory_space<vmem>>, vector<2x4x16xf32>
    %c0_2 = arith.constant 0 : index
    %c0_3 = arith.constant 0 : index
    %1 = vector.load %arg1[%c0_2, %c0_3] : memref<16x32xf32, #tpu.memory_space<vmem>>, vector<16x32xf32>
    %2 = vector.extract_strided_slice %0 {offsets = [0, 0, 0], sizes = [1, 4, 16], strides = [1, 1, 1]} : vector<2x4x16xf32> to vector<1x4x16xf32>
    %3 = vector.shape_cast %2 : vector<1x4x16xf32> to vector<4x16xf32>
    %cst = arith.constant dense<0.000000e+00> : vector<4x32xf32>
    %4 = tpu.matmul %3, %1, %cst {dimension_numbers = #tpu.dot_dimension_numbers<[1], [0], [0], [1], [0, 0, 1, 1], [], []>} : vector<4x16xf32>, vector<16x32xf32>, vector<4x32xf32> -> vector<4x32xf32>
    %5 = vector.extract_strided_slice %0 {offsets = [1, 0, 0], sizes = [1, 4, 16], strides = [1, 1, 1]} : vector<2x4x16xf32> to vector<1x4x16xf32>
    %6 = vector.shape_cast %5 : vector<1x4x16xf32> to vector<4x16xf32>
    %cst_4 = arith.constant dense<0.000000e+00> : vector<4x32xf32>
    %7 = tpu.matmul %6, %1, %cst_4 {dimension_numbers = #tpu.dot_dimension_numbers<[1], [0], [0], [1], [0, 0, 1, 1], [], []>} : vector<4x16xf32>, vector<16x32xf32>, vector<4x32xf32> -> vector<4x32xf32>
    %8 = vector.shape_cast %4 : vector<4x32xf32> to vector<1x4x32xf32>
    %9 = vector.shape_cast %7 : vector<4x32xf32> to vector<1x4x32xf32>
    %10 = tpu.concatenate %8, %9 in 0 : vector<1x4x32xf32>, vector<1x4x32xf32> -> vector<2x4x32xf32>
    %c0_5 = arith.constant 0 : index
    %c0_6 = arith.constant 0 : index
    %c0_7 = arith.constant 0 : index
    %11 = vector.load %arg2[%c0_5, %c0_6, %c0_7] : memref<3x2x4xf32, #tpu.memory_space<vmem>>, vector<3x2x4xf32>
    %c0_8 = arith.constant 0 : index
    %c0_9 = arith.constant 0 : index
    %c0_10 = arith.constant 0 : index
    %12 = vector.load %arg3[%c0_8, %c0_9, %c0_10] : memref<2x2x1xf32, #tpu.memory_space<vmem>>, vector<2x2x1xf32>
    %13 = tpu.iota {dimensions = array<i32: 2>} : vector<2x4x32xi32>
    %c1_i32 = arith.constant 1 : i32
    %14 = tpu.dynamic_rotate %10 by %c1_i32 dim 2 : vector<2x4x32xf32>, i32 -> vector<2x4x32xf32>
    %c1_i32_11 = arith.constant 1 : i32
    %15 = vector.broadcast %c1_i32_11 : i32 to vector<2x4x32xi32>
    %16 = arith.cmpi sge, %13, %15 : vector<2x4x32xi32>
    %cst_12 = arith.constant 0.000000e+00 : f32
    %17 = vector.broadcast %cst_12 : f32 to vector<2x4x32xf32>
    %18 = arith.select %16, %14, %17 : vector<2x4x32xi1>, vector<2x4x32xf32>
    %19 = tpu.iota {dimensions = array<i32: 2>} : vector<2x4x32xi32>
    %c31_i32 = arith.constant 31 : i32
    %20 = tpu.dynamic_rotate %10 by %c31_i32 dim 2 : vector<2x4x32xf32>, i32 -> vector<2x4x32xf32>
    %c31_i32_13 = arith.constant 31 : i32
    %21 = vector.broadcast %c31_i32_13 : i32 to vector<2x4x32xi32>
    %22 = arith.cmpi slt, %19, %21 : vector<2x4x32xi32>
    %cst_14 = arith.constant 0.000000e+00 : f32
    %23 = vector.broadcast %cst_14 : f32 to vector<2x4x32xf32>
    %24 = arith.select %22, %20, %23 : vector<2x4x32xi1>, vector<2x4x32xf32>
    %25 = vector.extract_strided_slice %11 {offsets = [0, 0, 0], sizes = [1, 2, 4], strides = [1, 1, 1]} : vector<3x2x4xf32> to vector<1x2x4xf32>
    %26 = vector.shape_cast %25 : vector<1x2x4xf32> to vector<2x4xf32>
    %27 = vector.extract_strided_slice %11 {offsets = [1, 0, 0], sizes = [1, 2, 4], strides = [1, 1, 1]} : vector<3x2x4xf32> to vector<1x2x4xf32>
    %28 = vector.shape_cast %27 : vector<1x2x4xf32> to vector<2x4xf32>
    %29 = vector.extract_strided_slice %11 {offsets = [2, 0, 0], sizes = [1, 2, 4], strides = [1, 1, 1]} : vector<3x2x4xf32> to vector<1x2x4xf32>
    %30 = vector.shape_cast %29 : vector<1x2x4xf32> to vector<2x4xf32>
    %31 = vector.extract_strided_slice %18 {offsets = [0, 0, 0], sizes = [1, 4, 32], strides = [1, 1, 1]} : vector<2x4x32xf32> to vector<1x4x32xf32>
    %32 = vector.shape_cast %31 : vector<1x4x32xf32> to vector<4x32xf32>
    %cst_15 = arith.constant dense<0.000000e+00> : vector<2x32xf32>
    %33 = tpu.matmul %26, %32, %cst_15 {dimension_numbers = #tpu.dot_dimension_numbers<[1], [0], [0], [1], [0, 0, 1, 1], [], []>} : vector<2x4xf32>, vector<4x32xf32>, vector<2x32xf32> -> vector<2x32xf32>
    %34 = vector.extract_strided_slice %10 {offsets = [0, 0, 0], sizes = [1, 4, 32], strides = [1, 1, 1]} : vector<2x4x32xf32> to vector<1x4x32xf32>
    %35 = vector.shape_cast %34 : vector<1x4x32xf32> to vector<4x32xf32>
    %cst_16 = arith.constant dense<0.000000e+00> : vector<2x32xf32>
    %36 = tpu.matmul %28, %35, %cst_16 {dimension_numbers = #tpu.dot_dimension_numbers<[1], [0], [0], [1], [0, 0, 1, 1], [], []>} : vector<2x4xf32>, vector<4x32xf32>, vector<2x32xf32> -> vector<2x32xf32>
    %37 = arith.addf %33, %36 : vector<2x32xf32>
    %38 = vector.extract_strided_slice %24 {offsets = [0, 0, 0], sizes = [1, 4, 32], strides = [1, 1, 1]} : vector<2x4x32xf32> to vector<1x4x32xf32>
    %39 = vector.shape_cast %38 : vector<1x4x32xf32> to vector<4x32xf32>
    %cst_17 = arith.constant dense<0.000000e+00> : vector<2x32xf32>
    %40 = tpu.matmul %30, %39, %cst_17 {dimension_numbers = #tpu.dot_dimension_numbers<[1], [0], [0], [1], [0, 0, 1, 1], [], []>} : vector<2x4xf32>, vector<4x32xf32>, vector<2x32xf32> -> vector<2x32xf32>
    %41 = arith.addf %37, %40 : vector<2x32xf32>
    %42 = vector.extract_strided_slice %18 {offsets = [1, 0, 0], sizes = [1, 4, 32], strides = [1, 1, 1]} : vector<2x4x32xf32> to vector<1x4x32xf32>
    %43 = vector.shape_cast %42 : vector<1x4x32xf32> to vector<4x32xf32>
    %cst_18 = arith.constant dense<0.000000e+00> : vector<2x32xf32>
    %44 = tpu.matmul %26, %43, %cst_18 {dimension_numbers = #tpu.dot_dimension_numbers<[1], [0], [0], [1], [0, 0, 1, 1], [], []>} : vector<2x4xf32>, vector<4x32xf32>, vector<2x32xf32> -> vector<2x32xf32>
    %45 = vector.extract_strided_slice %10 {offsets = [1, 0, 0], sizes = [1, 4, 32], strides = [1, 1, 1]} : vector<2x4x32xf32> to vector<1x4x32xf32>
    %46 = vector.shape_cast %45 : vector<1x4x32xf32> to vector<4x32xf32>
    %cst_19 = arith.constant dense<0.000000e+00> : vector<2x32xf32>
    %47 = tpu.matmul %28, %46, %cst_19 {dimension_numbers = #tpu.dot_dimension_numbers<[1], [0], [0], [1], [0, 0, 1, 1], [], []>} : vector<2x4xf32>, vector<4x32xf32>, vector<2x32xf32> -> vector<2x32xf32>
    %48 = arith.addf %44, %47 : vector<2x32xf32>
    %49 = vector.extract_strided_slice %24 {offsets = [1, 0, 0], sizes = [1, 4, 32], strides = [1, 1, 1]} : vector<2x4x32xf32> to vector<1x4x32xf32>
    %50 = vector.shape_cast %49 : vector<1x4x32xf32> to vector<4x32xf32>
    %cst_20 = arith.constant dense<0.000000e+00> : vector<2x32xf32>
    %51 = tpu.matmul %30, %50, %cst_20 {dimension_numbers = #tpu.dot_dimension_numbers<[1], [0], [0], [1], [0, 0, 1, 1], [], []>} : vector<2x4xf32>, vector<4x32xf32>, vector<2x32xf32> -> vector<2x32xf32>
    %52 = arith.addf %48, %51 : vector<2x32xf32>
    %53 = vector.shape_cast %41 : vector<2x32xf32> to vector<1x2x32xf32>
    %54 = vector.shape_cast %52 : vector<2x32xf32> to vector<1x2x32xf32>
    %55 = tpu.concatenate %53, %54 in 0 : vector<1x2x32xf32>, vector<1x2x32xf32> -> vector<2x2x32xf32>
    %cst_21 = arith.constant dense<0.000000e+00> : vector<2x2xf32>
    %56 = vector.multi_reduction <add>, %55, %cst_21 [2] : vector<2x2x32xf32> to vector<2x2xf32>
    %57 = vector.shape_cast %56 : vector<2x2xf32> to vector<2x2x1xf32>
    %cst_22 = arith.constant dense<0.000000e+00> : vector<2x1xf32>
    %58 = vector.multi_reduction <add>, %57, %cst_22 [0] : vector<2x2x1xf32> to vector<2x1xf32>
    %59 = vector.shape_cast %58 : vector<2x1xf32> to vector<1x2x1xf32>
    %60 = arith.mulf %55, %55 : vector<2x2x32xf32>
    %cst_23 = arith.constant dense<0.000000e+00> : vector<2x2xf32>
    %61 = vector.multi_reduction <add>, %60, %cst_23 [2] : vector<2x2x32xf32> to vector<2x2xf32>
    %62 = vector.shape_cast %61 : vector<2x2xf32> to vector<2x2x1xf32>
    %cst_24 = arith.constant dense<0.000000e+00> : vector<2x1xf32>
    %63 = vector.multi_reduction <add>, %62, %cst_24 [0] : vector<2x2x1xf32> to vector<2x1xf32>
    %64 = vector.shape_cast %63 : vector<2x1xf32> to vector<1x2x1xf32>
    %cst_25 = arith.constant 6.400000e+01 : f32
    %65 = vector.broadcast %cst_25 : f32 to vector<1x2x1xf32>
    %66 = arith.divf %59, %65 : vector<1x2x1xf32>
    %cst_26 = arith.constant 6.400000e+01 : f32
    %67 = vector.broadcast %cst_26 : f32 to vector<1x2x1xf32>
    %68 = arith.divf %64, %67 : vector<1x2x1xf32>
    %69 = arith.mulf %66, %66 : vector<1x2x1xf32>
    %70 = arith.subf %68, %69 : vector<1x2x1xf32>
    %71 = vector.extract_strided_slice %12 {offsets = [0, 0, 0], sizes = [1, 2, 1], strides = [1, 1, 1]} : vector<2x2x1xf32> to vector<1x2x1xf32>
    %cst_27 = arith.constant 9.99999974E-6 : f32
    %72 = vector.broadcast %cst_27 : f32 to vector<1x2x1xf32>
    %73 = arith.addf %70, %72 : vector<1x2x1xf32>
    %74 = math.rsqrt %73 : vector<1x2x1xf32>
    %75 = arith.mulf %71, %74 : vector<1x2x1xf32>
    %76 = vector.extract_strided_slice %12 {offsets = [1, 0, 0], sizes = [1, 2, 1], strides = [1, 1, 1]} : vector<2x2x1xf32> to vector<1x2x1xf32>
    %77 = arith.mulf %66, %75 : vector<1x2x1xf32>
    %78 = arith.subf %76, %77 : vector<1x2x1xf32>
    %79 = vector.broadcast %75 : vector<1x2x1xf32> to vector<2x2x32xf32>
    %80 = arith.mulf %55, %79 : vector<2x2x32xf32>
    %81 = vector.broadcast %78 : vector<1x2x1xf32> to vector<2x2x32xf32>
    %82 = arith.addf %80, %81 : vector<2x2x32xf32>
    %cst_28 = arith.constant 0.000000e+00 : f32
    %83 = vector.broadcast %cst_28 : f32 to vector<2x2x32xf32>
    %84 = arith.maximumf %82, %83 : vector<2x2x32xf32>
    %c0_29 = arith.constant 0 : index
    %c0_30 = arith.constant 0 : index
    %c0_31 = arith.constant 0 : index
    %85 = vector.load %arg4[%c0_29, %c0_30, %c0_31] : memref<3x8x2xf32, #tpu.memory_space<vmem>>, vector<3x8x2xf32>
    %c0_32 = arith.constant 0 : index
    %c0_33 = arith.constant 0 : index
    %c0_34 = arith.constant 0 : index
    %86 = vector.load %arg5[%c0_32, %c0_33, %c0_34] : memref<2x8x1xf32, #tpu.memory_space<vmem>>, vector<2x8x1xf32>
    %87 = tpu.iota {dimensions = array<i32: 2>} : vector<2x2x32xi32>
    %c1_i32_35 = arith.constant 1 : i32
    %88 = tpu.dynamic_rotate %84 by %c1_i32_35 dim 2 : vector<2x2x32xf32>, i32 -> vector<2x2x32xf32>
    %c1_i32_36 = arith.constant 1 : i32
    %89 = vector.broadcast %c1_i32_36 : i32 to vector<2x2x32xi32>
    %90 = arith.cmpi sge, %87, %89 : vector<2x2x32xi32>
    %cst_37 = arith.constant 0.000000e+00 : f32
    %91 = vector.broadcast %cst_37 : f32 to vector<2x2x32xf32>
    %92 = arith.select %90, %88, %91 : vector<2x2x32xi1>, vector<2x2x32xf32>
    %93 = tpu.iota {dimensions = array<i32: 2>} : vector<2x2x32xi32>
    %c31_i32_38 = arith.constant 31 : i32
    %94 = tpu.dynamic_rotate %84 by %c31_i32_38 dim 2 : vector<2x2x32xf32>, i32 -> vector<2x2x32xf32>
    %c31_i32_39 = arith.constant 31 : i32
    %95 = vector.broadcast %c31_i32_39 : i32 to vector<2x2x32xi32>
    %96 = arith.cmpi slt, %93, %95 : vector<2x2x32xi32>
    %cst_40 = arith.constant 0.000000e+00 : f32
    %97 = vector.broadcast %cst_40 : f32 to vector<2x2x32xf32>
    %98 = arith.select %96, %94, %97 : vector<2x2x32xi1>, vector<2x2x32xf32>
    %99 = vector.extract_strided_slice %85 {offsets = [0, 0, 0], sizes = [1, 8, 2], strides = [1, 1, 1]} : vector<3x8x2xf32> to vector<1x8x2xf32>
    %100 = vector.shape_cast %99 : vector<1x8x2xf32> to vector<8x2xf32>
    %101 = vector.extract_strided_slice %85 {offsets = [1, 0, 0], sizes = [1, 8, 2], strides = [1, 1, 1]} : vector<3x8x2xf32> to vector<1x8x2xf32>
    %102 = vector.shape_cast %101 : vector<1x8x2xf32> to vector<8x2xf32>
    %103 = vector.extract_strided_slice %85 {offsets = [2, 0, 0], sizes = [1, 8, 2], strides = [1, 1, 1]} : vector<3x8x2xf32> to vector<1x8x2xf32>
    %104 = vector.shape_cast %103 : vector<1x8x2xf32> to vector<8x2xf32>
    %105 = vector.extract_strided_slice %92 {offsets = [0, 0, 0], sizes = [1, 2, 32], strides = [1, 1, 1]} : vector<2x2x32xf32> to vector<1x2x32xf32>
    %106 = vector.shape_cast %105 : vector<1x2x32xf32> to vector<2x32xf32>
    %cst_41 = arith.constant dense<0.000000e+00> : vector<8x32xf32>
    %107 = tpu.matmul %100, %106, %cst_41 {dimension_numbers = #tpu.dot_dimension_numbers<[1], [0], [0], [1], [0, 0, 1, 1], [], []>} : vector<8x2xf32>, vector<2x32xf32>, vector<8x32xf32> -> vector<8x32xf32>
    %108 = vector.extract_strided_slice %84 {offsets = [0, 0, 0], sizes = [1, 2, 32], strides = [1, 1, 1]} : vector<2x2x32xf32> to vector<1x2x32xf32>
    %109 = vector.shape_cast %108 : vector<1x2x32xf32> to vector<2x32xf32>
    %cst_42 = arith.constant dense<0.000000e+00> : vector<8x32xf32>
    %110 = tpu.matmul %102, %109, %cst_42 {dimension_numbers = #tpu.dot_dimension_numbers<[1], [0], [0], [1], [0, 0, 1, 1], [], []>} : vector<8x2xf32>, vector<2x32xf32>, vector<8x32xf32> -> vector<8x32xf32>
    %111 = arith.addf %107, %110 : vector<8x32xf32>
    %112 = vector.extract_strided_slice %98 {offsets = [0, 0, 0], sizes = [1, 2, 32], strides = [1, 1, 1]} : vector<2x2x32xf32> to vector<1x2x32xf32>
    %113 = vector.shape_cast %112 : vector<1x2x32xf32> to vector<2x32xf32>
    %cst_43 = arith.constant dense<0.000000e+00> : vector<8x32xf32>
    %114 = tpu.matmul %104, %113, %cst_43 {dimension_numbers = #tpu.dot_dimension_numbers<[1], [0], [0], [1], [0, 0, 1, 1], [], []>} : vector<8x2xf32>, vector<2x32xf32>, vector<8x32xf32> -> vector<8x32xf32>
    %115 = arith.addf %111, %114 : vector<8x32xf32>
    %116 = vector.extract_strided_slice %92 {offsets = [1, 0, 0], sizes = [1, 2, 32], strides = [1, 1, 1]} : vector<2x2x32xf32> to vector<1x2x32xf32>
    %117 = vector.shape_cast %116 : vector<1x2x32xf32> to vector<2x32xf32>
    %cst_44 = arith.constant dense<0.000000e+00> : vector<8x32xf32>
    %118 = tpu.matmul %100, %117, %cst_44 {dimension_numbers = #tpu.dot_dimension_numbers<[1], [0], [0], [1], [0, 0, 1, 1], [], []>} : vector<8x2xf32>, vector<2x32xf32>, vector<8x32xf32> -> vector<8x32xf32>
    %119 = vector.extract_strided_slice %84 {offsets = [1, 0, 0], sizes = [1, 2, 32], strides = [1, 1, 1]} : vector<2x2x32xf32> to vector<1x2x32xf32>
    %120 = vector.shape_cast %119 : vector<1x2x32xf32> to vector<2x32xf32>
    %cst_45 = arith.constant dense<0.000000e+00> : vector<8x32xf32>
    %121 = tpu.matmul %102, %120, %cst_45 {dimension_numbers = #tpu.dot_dimension_numbers<[1], [0], [0], [1], [0, 0, 1, 1], [], []>} : vector<8x2xf32>, vector<2x32xf32>, vector<8x32xf32> -> vector<8x32xf32>
    %122 = arith.addf %118, %121 : vector<8x32xf32>
    %123 = vector.extract_strided_slice %98 {offsets = [1, 0, 0], sizes = [1, 2, 32], strides = [1, 1, 1]} : vector<2x2x32xf32> to vector<1x2x32xf32>
    %124 = vector.shape_cast %123 : vector<1x2x32xf32> to vector<2x32xf32>
    %cst_46 = arith.constant dense<0.000000e+00> : vector<8x32xf32>
    %125 = tpu.matmul %104, %124, %cst_46 {dimension_numbers = #tpu.dot_dimension_numbers<[1], [0], [0], [1], [0, 0, 1, 1], [], []>} : vector<8x2xf32>, vector<2x32xf32>, vector<8x32xf32> -> vector<8x32xf32>
    %126 = arith.addf %122, %125 : vector<8x32xf32>
    %127 = vector.shape_cast %115 : vector<8x32xf32> to vector<1x8x32xf32>
    %128 = vector.shape_cast %126 : vector<8x32xf32> to vector<1x8x32xf32>
    %129 = tpu.concatenate %127, %128 in 0 : vector<1x8x32xf32>, vector<1x8x32xf32> -> vector<2x8x32xf32>
    %cst_47 = arith.constant dense<0.000000e+00> : vector<2x8xf32>
    %130 = vector.multi_reduction <add>, %129, %cst_47 [2] : vector<2x8x32xf32> to vector<2x8xf32>
    %131 = vector.shape_cast %130 : vector<2x8xf32> to vector<2x8x1xf32>
    %cst_48 = arith.constant dense<0.000000e+00> : vector<8x1xf32>
    %132 = vector.multi_reduction <add>, %131, %cst_48 [0] : vector<2x8x1xf32> to vector<8x1xf32>
    %133 = vector.shape_cast %132 : vector<8x1xf32> to vector<1x8x1xf32>
    %134 = arith.mulf %129, %129 : vector<2x8x32xf32>
    %cst_49 = arith.constant dense<0.000000e+00> : vector<2x8xf32>
    %135 = vector.multi_reduction <add>, %134, %cst_49 [2] : vector<2x8x32xf32> to vector<2x8xf32>
    %136 = vector.shape_cast %135 : vector<2x8xf32> to vector<2x8x1xf32>
    %cst_50 = arith.constant dense<0.000000e+00> : vector<8x1xf32>
    %137 = vector.multi_reduction <add>, %136, %cst_50 [0] : vector<2x8x1xf32> to vector<8x1xf32>
    %138 = vector.shape_cast %137 : vector<8x1xf32> to vector<1x8x1xf32>
    %cst_51 = arith.constant 6.400000e+01 : f32
    %139 = vector.broadcast %cst_51 : f32 to vector<1x8x1xf32>
    %140 = arith.divf %133, %139 : vector<1x8x1xf32>
    %cst_52 = arith.constant 6.400000e+01 : f32
    %141 = vector.broadcast %cst_52 : f32 to vector<1x8x1xf32>
    %142 = arith.divf %138, %141 : vector<1x8x1xf32>
    %143 = arith.mulf %140, %140 : vector<1x8x1xf32>
    %144 = arith.subf %142, %143 : vector<1x8x1xf32>
    %145 = vector.extract_strided_slice %86 {offsets = [0, 0, 0], sizes = [1, 8, 1], strides = [1, 1, 1]} : vector<2x8x1xf32> to vector<1x8x1xf32>
    %cst_53 = arith.constant 9.99999974E-6 : f32
    %146 = vector.broadcast %cst_53 : f32 to vector<1x8x1xf32>
    %147 = arith.addf %144, %146 : vector<1x8x1xf32>
    %148 = math.rsqrt %147 : vector<1x8x1xf32>
    %149 = arith.mulf %145, %148 : vector<1x8x1xf32>
    %150 = vector.extract_strided_slice %86 {offsets = [1, 0, 0], sizes = [1, 8, 1], strides = [1, 1, 1]} : vector<2x8x1xf32> to vector<1x8x1xf32>
    %151 = arith.mulf %140, %149 : vector<1x8x1xf32>
    %152 = arith.subf %150, %151 : vector<1x8x1xf32>
    %153 = vector.broadcast %149 : vector<1x8x1xf32> to vector<2x8x32xf32>
    %154 = arith.mulf %129, %153 : vector<2x8x32xf32>
    %155 = vector.broadcast %152 : vector<1x8x1xf32> to vector<2x8x32xf32>
    %156 = arith.addf %154, %155 : vector<2x8x32xf32>
    %cst_54 = arith.constant 0.000000e+00 : f32
    %157 = vector.broadcast %cst_54 : f32 to vector<2x8x32xf32>
    %158 = arith.maximumf %156, %157 : vector<2x8x32xf32>
    %c0_55 = arith.constant 0 : index
    %c0_56 = arith.constant 0 : index
    %c0_57 = arith.constant 0 : index
    %159 = vector.load %arg6[%c0_55, %c0_56, %c0_57] : memref<2x8x32xf32, #tpu.memory_space<vmem>>, vector<2x8x32xf32>
    tpu.vector_store %arg6[%c0_55, %c0_56, %c0_57], %158 {strides = array<i32>} : memref<2x8x32xf32, #tpu.memory_space<vmem>>, vector<2x8x32xf32>,
    return
  }
}

</mosaic_0001>

<llo_original>
// kernel: tpu_custom_call.1
$region0: #{tpu_custom_call.1}
  #allocation0 [shape = 'u32[]', space=smem, size = 0x4, offset = 0x4, fixed_abs, tag = 'smem constant byte address 0x4 - core index']
  #allocation1 [shape = 'u32[144,128]{1,0:T(1,128)}', space=vmem, size = 0x12000, scoped, tag = 'internal scratch']
  %s0 = inlined_call_operand.vmem [shape: f32[2,4,16], index: 0, kind: input, shape index: {}]
  %s1 = inlined_call_operand.vmem [shape: f32[16,32], index: 1, kind: input, shape index: {}]
  %s2 = inlined_call_operand.vmem [shape: f32[3,2,4], index: 2, kind: input, shape index: {}]
  %s3 = inlined_call_operand.vmem [shape: f32[2,2,1], index: 3, kind: input, shape index: {}]
  %s4 = inlined_call_operand.vmem [shape: f32[3,8,2], index: 4, kind: input, shape index: {}]
  %s5 = inlined_call_operand.vmem [shape: f32[2,8,1], index: 5, kind: input, shape index: {}]
  %s6 = inlined_call_operand.hbm [shape: f32[2,8,32], index: 6, kind: output, shape index: {}]
  %s7 = sld [smem:[#allocation0]]
  $region34: #{tpu_custom_call.1} parent=0
    _
  %s9 = ssub.s32 1, %s7
  %s10 = scalar_select 0, %s9, %s7
  $region1: #{tpu_custom_call.1} parent=0
    #allocation2 [shape = 'u8[8192]{0}', space=vmem, size = 0x2000, scoped, tag = 'output window, operand 0, single buffered']
    #allocation3 [shape = 's32[1]{0}', space=sflag, size = 0x4, scoped, tag = 'scoped memory for tpu_custom_call.1']
    %11 = vsyncpa [#allocation3], 0
    // Predicated region
    $region2: #{tpu_custom_call.1} parent=1 // pred_check
      _
    $region3: #{tpu_custom_call.1} parent=1 // pred_check_branch
      %13 = sbr.rel (0) target = $region5
    $region4: #{tpu_custom_call.1} parent=1 // pred_region
      _
    $region5: #{tpu_custom_call.1} parent=1 // pred_fallthru
      _
    // Predicated region
    $region6: #{tpu_custom_call.1} parent=1 // pred_check
      _
    $region7: #{tpu_custom_call.1} parent=1 // pred_check_branch
      %15 = sbr.rel (0) target = $region9
    $region8: #{tpu_custom_call.1} parent=1 // pred_region
      _
    $region9: #{tpu_custom_call.1} parent=1 // pred_fallthru
      _
    // Predicated region
    $region10: #{tpu_custom_call.1} parent=1 // pred_check
      _
    $region11: #{tpu_custom_call.1} parent=1 // pred_check_branch
      %17 = sbr.rel (0) target = $region13
    $region12: #{tpu_custom_call.1} parent=1 // pred_region
      _
    $region13: #{tpu_custom_call.1} parent=1 // pred_fallthru
      _
    // Predicated region
    $region14: #{tpu_custom_call.1} parent=1 // pred_check
      _
    $region15: #{tpu_custom_call.1} parent=1 // pred_check_branch
      %19 = sbr.rel (0) target = $region17
    $region16: #{tpu_custom_call.1} parent=1 // pred_region
      _
    $region17: #{tpu_custom_call.1} parent=1 // pred_fallthru
      _
    // Predicated region
    $region18: #{tpu_custom_call.1} parent=1 // pred_check
      _
    $region19: #{tpu_custom_call.1} parent=1 // pred_check_branch
      %21 = sbr.rel (0) target = $region21
    $region20: #{tpu_custom_call.1} parent=1 // pred_region
      _
    $region21: #{tpu_custom_call.1} parent=1 // pred_fallthru
      _
    // Predicated region
    $region22: #{tpu_custom_call.1} parent=1 // pred_check
      _
    $region23: #{tpu_custom_call.1} parent=1 // pred_check_branch
      %23 = sbr.rel (0) target = $region25
    $region24: #{tpu_custom_call.1} parent=1 // pred_region
      _
    $region25: #{tpu_custom_call.1} parent=1 // pred_fallthru
      _
    %v24 = vld [vmem:[%s0] sm:$0xf]
    %v25 = vld [vmem:[%s0 + $0x4] sm:$0xf]
    %v26 = vld [vmem:[%s1] sm:$0xff]
    %v27 = vld [vmem:[%s1 + $0x8] sm:$0xff]
    %vm28 = vcmask 130048
    %v30 = vsel %vm28, %v24, 0
    %32 = vmatprep.subr.mxu0 0.0
    %33 = vmatpush1.msra.mxu0 %v26
    %34 = vmatprep.subr.mxu0 0.0
    %35 = vmatpush1.msra.mxu0 %v27
    %36 = vmatprep.subr.mxu0 0.0
    %37 = vmatpush1.msra.mxu0 0.0
    %38 = vmatprep.subr.mxu0 0.0
    %39 = vmatpush1.msra.mxu0 0.0
    %40 = vmatprep.subr.mxu0 0.0
    %41 = vmatpush1.msra.mxu0 0.0
    %42 = vmatprep.subr.mxu0 0.0
    %43 = vmatpush1.msra.mxu0 0.0
    %44 = vmatprep.subr.mxu0 0.0
    %45 = vmatpush1.msra.mxu0 0.0
    %46 = vmatprep.subr.mxu0 0.0
    %47 = vmatpush1.msra.mxu0 0.0
    %48 = vmatprep.subr.mxu0 0.0
    %49 = vmatpush1.msra.mxu0 0.0
    %50 = vmatprep.subr.mxu0 0.0
    %51 = vmatpush1.msra.mxu0 0.0
    %52 = vmatprep.subr.mxu0 0.0
    %53 = vmatpush1.msra.mxu0 0.0
    %54 = vmatprep.subr.mxu0 0.0
    %55 = vmatpush1.msra.mxu0 0.0
    %56 = vmatprep.subr.mxu0 0.0
    %57 = vmatpush1.msra.mxu0 0.0
    %58 = vmatprep.subr.mxu0 0.0
    %59 = vmatpush1.msra.mxu0 0.0
    %60 = vmatprep.subr.mxu0 0.0
    %61 = vmatpush1.msra.mxu0 0.0
    %62 = vmatprep.subr.mxu0 0.0
    %63 = vmatpush1.msra.mxu0 0.0
    %64 = vmatprep.subr.mxu0 0.0
    %65 = vmatpush1.msra.mxu0 0.0
    %66 = vmatprep.subr.mxu0 0.0
    %67 = vmatpush1.msra.mxu0 0.0
    %68 = vmatprep.subr.mxu0 0.0
    %69 = vmatpush1.msra.mxu0 0.0
    %70 = vmatprep.subr.mxu0 0.0
    %71 = vmatpush1.msra.mxu0 0.0
    %72 = vmatprep.subr.mxu0 0.0
    %73 = vmatpush1.msra.mxu0 0.0
    %74 = vmatprep.subr.mxu0 0.0
    %75 = vmatpush1.msra.mxu0 0.0
    %76 = vmatprep.subr.mxu0 0.0
    %77 = vmatpush1.msra.mxu0 0.0
    %78 = vmatprep.subr.mxu0 0.0
    %79 = vmatpush1.msra.mxu0 0.0
    %80 = vmatprep.subr.mxu0 0.0
    %81 = vmatpush1.msra.mxu0 0.0
    %82 = vmatprep.subr.mxu0 0.0
    %83 = vmatpush1.msra.mxu0 0.0
    %84 = vmatprep.subr.mxu0 0.0
    %85 = vmatpush1.msra.mxu0 0.0
    %86 = vmatprep.subr.mxu0 0.0
    %87 = vmatpush1.msra.mxu0 0.0
    %88 = vmatprep.subr.mxu0 0.0
    %89 = vmatpush1.msra.mxu0 0.0
    %90 = vmatprep.subr.mxu0 0.0
    %91 = vmatpush1.msra.mxu0 0.0
    %92 = vmatprep.subr.mxu0 0.0
    %93 = vmatpush1.msra.mxu0 0.0
    %94 = vmatprep.subr.mxu0 0.0
    %95 = vmatpush1.msra.mxu0 0.0
    %96 = vmatprep.mubr.f32.mxu0 0.0
    %97 = vmatmul.mubr.f32.gmra.mrb[0].mxu0 %v30
    %v98 = vpop.f32.mrb[0].mxu0
    %v99 = vadd.f32 0.0, %v98
    %v100 = vpop.f32.mrb[0].mxu0
    %101 = vdwg.mxu0
    %v103 = vsel %vm28, %v25, 0
    %105 = vmatprep.subr.mxu0 0.0
    %106 = vmatpush1.msra.mxu0 %v26
    %107 = vmatprep.subr.mxu0 0.0
    %108 = vmatpush1.msra.mxu0 %v27
    %109 = vmatprep.subr.mxu0 0.0
    %110 = vmatpush1.msra.mxu0 0.0
    %111 = vmatprep.subr.mxu0 0.0
    %112 = vmatpush1.msra.mxu0 0.0
    %113 = vmatprep.subr.mxu0 0.0
    %114 = vmatpush1.msra.mxu0 0.0
    %115 = vmatprep.subr.mxu0 0.0
    %116 = vmatpush1.msra.mxu0 0.0
    %117 = vmatprep.subr.mxu0 0.0
    %118 = vmatpush1.msra.mxu0 0.0
    %119 = vmatprep.subr.mxu0 0.0
    %120 = vmatpush1.msra.mxu0 0.0
    %121 = vmatprep.subr.mxu0 0.0
    %122 = vmatpush1.msra.mxu0 0.0
    %123 = vmatprep.subr.mxu0 0.0
    %124 = vmatpush1.msra.mxu0 0.0
    %125 = vmatprep.subr.mxu0 0.0
    %126 = vmatpush1.msra.mxu0 0.0
    %127 = vmatprep.subr.mxu0 0.0
    %128 = vmatpush1.msra.mxu0 0.0
    %129 = vmatprep.subr.mxu0 0.0
    %130 = vmatpush1.msra.mxu0 0.0
    %131 = vmatprep.subr.mxu0 0.0
    %132 = vmatpush1.msra.mxu0 0.0
    %133 = vmatprep.subr.mxu0 0.0
    %134 = vmatpush1.msra.mxu0 0.0
    %135 = vmatprep.subr.mxu0 0.0
    %136 = vmatpush1.msra.mxu0 0.0
    %137 = vmatprep.subr.mxu0 0.0
    %138 = vmatpush1.msra.mxu0 0.0
    %139 = vmatprep.subr.mxu0 0.0
    %140 = vmatpush1.msra.mxu0 0.0
    %141 = vmatprep.subr.mxu0 0.0
    %142 = vmatpush1.msra.mxu0 0.0
    %143 = vmatprep.subr.mxu0 0.0
    %144 = vmatpush1.msra.mxu0 0.0
    %145 = vmatprep.subr.mxu0 0.0
    %146 = vmatpush1.msra.mxu0 0.0
    %147 = vmatprep.subr.mxu0 0.0
    %148 = vmatpush1.msra.mxu0 0.0
    %149 = vmatprep.subr.mxu0 0.0
    %150 = vmatpush1.msra.mxu0 0.0
    %151 = vmatprep.subr.mxu0 0.0
    %152 = vmatpush1.msra.mxu0 0.0
    %153 = vmatprep.subr.mxu0 0.0
    %154 = vmatpush1.msra.mxu0 0.0
    %155 = vmatprep.subr.mxu0 0.0
    %156 = vmatpush1.msra.mxu0 0.0
    %157 = vmatprep.subr.mxu0 0.0
    %158 = vmatpush1.msra.mxu0 0.0
    %159 = vmatprep.subr.mxu0 0.0
    %160 = vmatpush1.msra.mxu0 0.0
    %161 = vmatprep.subr.mxu0 0.0
    %162 = vmatpush1.msra.mxu0 0.0
    %163 = vmatprep.subr.mxu0 0.0
    %164 = vmatpush1.msra.mxu0 0.0
    %165 = vmatprep.subr.mxu0 0.0
    %166 = vmatpush1.msra.mxu0 0.0
    %167 = vmatprep.subr.mxu0 0.0
    %168 = vmatpush1.msra.mxu0 0.0
    %169 = vmatprep.mubr.f32.mxu0 0.0
    %170 = vmatmul.mubr.f32.gmra.mrb[0].mxu0 %v103
    %v171 = vpop.f32.mrb[0].mxu0
    %v172 = vadd.f32 0.0, %v171
    %v173 = vpop.f32.mrb[0].mxu0
    %174 = vdwg.mxu0
    %v175 = vld [vmem:[%s2] sm:$0x3]
    %v176 = vld [vmem:[%s2 + $0x2] sm:$0x3]
    %v177 = vld [vmem:[%s2 + $0x4] sm:$0x3]
    %v178 = vld [vmem:[%s3] sm:$0x3]
    %v179 = vld [vmem:[%s3 + $0x2] sm:$0x3]
    %v180 = vlaneseq
    %v181 = vand.u32 %v180, 127
    %vm182 = vcmask 1047808
    %183 = vrot.lane.b32.xlu0 %v99, 32
    %v184 = vpop.permute.xlu0 %183
    %v185 = vsel %vm182, %v184, %v99
    %186 = vrot.lane.b32.xlu0 %v172, 32
    %v187 = vpop.permute.xlu0 %186
    %v188 = vsel %vm182, %v187, %v172
    %189 = vrot.lane.b32.xlu0 %v185, 32
    %v190 = vpop.permute.xlu0 %189
    %191 = vrot.lane.b32.xlu0 %v188, 32
    %v192 = vpop.permute.xlu0 %191
    %v193 = vsel %vm182, %v190, %v99
    %v194 = vsel %vm182, %v192, %v172
    %vm195 = vcmp.ge.s32.totalorder %v181, 1
    %198 = vrot.lane.b32.xlu0 %v193, 97
    %v199 = vpop.permute.xlu0 %198
    %200 = vrot.lane.b32.xlu0 %v194, 97
    %v201 = vpop.permute.xlu0 %200
    %v204 = vsel %vm195, %v199, 0.0
    %v205 = vsel %vm195, %v201, 0.0
    %vm206 = vcmp.lt.s32.totalorder %v181, 31
    %207 = vrot.lane.b32.xlu0 %v193, 127
    %v208 = vpop.permute.xlu0 %207
    %209 = vrot.lane.b32.xlu0 %v194, 127
    %v210 = vpop.permute.xlu0 %209
    %v213 = vsel %vm206, %v208, 0.0
    %v214 = vsel %vm206, %v210, 0.0
    %vm215 = vcmask 31744
    %v217 = vsel %vm215, %v176, 0
    %vm219 = vcmask 1043456
    %v221 = vsel %vm219, %v99, 0
    %223 = vmatprep.subr.mxu0 0.0
    %224 = vmatpush1.msra.mxu0 %v221
    %225 = vmatprep.subr.mxu0 0.0
    %226 = vmatpush1.msra.mxu0 0.0
    %227 = vmatprep.subr.mxu0 0.0
    %228 = vmatpush1.msra.mxu0 0.0
    %229 = vmatprep.subr.mxu0 0.0
    %230 = vmatpush1.msra.mxu0 0.0
    %231 = vmatprep.subr.mxu0 0.0
    %232 = vmatpush1.msra.mxu0 0.0
    %233 = vmatprep.subr.mxu0 0.0
    %234 = vmatpush1.msra.mxu0 0.0
    %235 = vmatprep.subr.mxu0 0.0
    %236 = vmatpush1.msra.mxu0 0.0
    %237 = vmatprep.subr.mxu0 0.0
    %238 = vmatpush1.msra.mxu0 0.0
    %239 = vmatprep.subr.mxu0 0.0
    %240 = vmatpush1.msra.mxu0 0.0
    %241 = vmatprep.subr.mxu0 0.0
    %242 = vmatpush1.msra.mxu0 0.0
    %243 = vmatprep.subr.mxu0 0.0
    %244 = vmatpush1.msra.mxu0 0.0
    %245 = vmatprep.subr.mxu0 0.0
    %246 = vmatpush1.msra.mxu0 0.0
    %247 = vmatprep.subr.mxu0 0.0
    %248 = vmatpush1.msra.mxu0 0.0
    %249 = vmatprep.subr.mxu0 0.0
    %250 = vmatpush1.msra.mxu0 0.0
    %251 = vmatprep.subr.mxu0 0.0
    %252 = vmatpush1.msra.mxu0 0.0
    %253 = vmatprep.subr.mxu0 0.0
    %254 = vmatpush1.msra.mxu0 0.0
    %255 = vmatprep.subr.mxu0 0.0
    %256 = vmatpush1.msra.mxu0 0.0
    %257 = vmatprep.subr.mxu0 0.0
    %258 = vmatpush1.msra.mxu0 0.0
    %259 = vmatprep.subr.mxu0 0.0
    %260 = vmatpush1.msra.mxu0 0.0
    %261 = vmatprep.subr.mxu0 0.0
    %262 = vmatpush1.msra.mxu0 0.0
    %263 = vmatprep.subr.mxu0 0.0
    %264 = vmatpush1.msra.mxu0 0.0
    %265 = vmatprep.subr.mxu0 0.0
    %266 = vmatpush1.msra.mxu0 0.0
    %267 = vmatprep.subr.mxu0 0.0
    %268 = vmatpush1.msra.mxu0 0.0
    %269 = vmatprep.subr.mxu0 0.0
    %270 = vmatpush1.msra.mxu0 0.0
    %271 = vmatprep.subr.mxu0 0.0
    %272 = vmatpush1.msra.mxu0 0.0
    %273 = vmatprep.subr.mxu0 0.0
    %274 = vmatpush1.msra.mxu0 0.0
    %275 = vmatprep.subr.mxu0 0.0
    %276 = vmatpush1.msra.mxu0 0.0
    %277 = vmatprep.subr.mxu0 0.0
    %278 = vmatpush1.msra.mxu0 0.0
    %279 = vmatprep.subr.mxu0 0.0
    %280 = vmatpush1.msra.mxu0 0.0
    %281 = vmatprep.subr.mxu0 0.0
    %282 = vmatpush1.msra.mxu0 0.0
    %283 = vmatprep.subr.mxu0 0.0
    %284 = vmatpush1.msra.mxu0 0.0
    %285 = vmatprep.subr.mxu0 0.0
    %286 = vmatpush1.msra.mxu0 0.0
    %287 = vmatprep.mubr.f32.mxu0 0.0
    %288 = vmatmul.mubr.f32.gmra.mrb[0].mxu0 %v217
    %v289 = vpop.f32.mrb[0].mxu0
    %v290 = vadd.f32 0.0, %v289
    %v291 = vpop.f32.mrb[0].mxu0
    %292 = vdwg.mxu0
    %v294 = vsel %vm215, %v175, 0
    %v297 = vsel %vm219, %v204, 0
    %299 = vmatprep.subr.mxu0 0.0
    %300 = vmatpush1.msra.mxu0 %v297
    %301 = vmatprep.subr.mxu0 0.0
    %302 = vmatpush1.msra.mxu0 0.0
    %303 = vmatprep.subr.mxu0 0.0
    %304 = vmatpush1.msra.mxu0 0.0
    %305 = vmatprep.subr.mxu0 0.0
    %306 = vmatpush1.msra.mxu0 0.0
    %307 = vmatprep.subr.mxu0 0.0
    %308 = vmatpush1.msra.mxu0 0.0
    %309 = vmatprep.subr.mxu0 0.0
    %310 = vmatpush1.msra.mxu0 0.0
    %311 = vmatprep.subr.mxu0 0.0
    %312 = vmatpush1.msra.mxu0 0.0
    %313 = vmatprep.subr.mxu0 0.0
    %314 = vmatpush1.msra.mxu0 0.0
    %315 = vmatprep.subr.mxu0 0.0
    %316 = vmatpush1.msra.mxu0 0.0
    %317 = vmatprep.subr.mxu0 0.0
    %318 = vmatpush1.msra.mxu0 0.0
    %319 = vmatprep.subr.mxu0 0.0
    %320 = vmatpush1.msra.mxu0 0.0
    %321 = vmatprep.subr.mxu0 0.0
    %322 = vmatpush1.msra.mxu0 0.0
    %323 = vmatprep.subr.mxu0 0.0
    %324 = vmatpush1.msra.mxu0 0.0
    %325 = vmatprep.subr.mxu0 0.0
    %326 = vmatpush1.msra.mxu0 0.0
    %327 = vmatprep.subr.mxu0 0.0
    %328 = vmatpush1.msra.mxu0 0.0
    %329 = vmatprep.subr.mxu0 0.0
    %330 = vmatpush1.msra.mxu0 0.0
    %331 = vmatprep.subr.mxu0 0.0
    %332 = vmatpush1.msra.mxu0 0.0
    %333 = vmatprep.subr.mxu0 0.0
    %334 = vmatpush1.msra.mxu0 0.0
    %335 = vmatprep.subr.mxu0 0.0
    %336 = vmatpush1.msra.mxu0 0.0
    %337 = vmatprep.subr.mxu0 0.0
    %338 = vmatpush1.msra.mxu0 0.0
    %339 = vmatprep.subr.mxu0 0.0
    %340 = vmatpush1.msra.mxu0 0.0
    %341 = vmatprep.subr.mxu0 0.0
    %342 = vmatpush1.msra.mxu0 0.0
    %343 = vmatprep.subr.mxu0 0.0
    %344 = vmatpush1.msra.mxu0 0.0
    %345 = vmatprep.subr.mxu0 0.0
    %346 = vmatpush1.msra.mxu0 0.0
    %347 = vmatprep.subr.mxu0 0.0
    %348 = vmatpush1.msra.mxu0 0.0
    %349 = vmatprep.subr.mxu0 0.0
    %350 = vmatpush1.msra.mxu0 0.0
    %351 = vmatprep.subr.mxu0 0.0
    %352 = vmatpush1.msra.mxu0 0.0
    %353 = vmatprep.subr.mxu0 0.0
    %354 = vmatpush1.msra.mxu0 0.0
    %355 = vmatprep.subr.mxu0 0.0
    %356 = vmatpush1.msra.mxu0 0.0
    %357 = vmatprep.subr.mxu0 0.0
    %358 = vmatpush1.msra.mxu0 0.0
    %359 = vmatprep.subr.mxu0 0.0
    %360 = vmatpush1.msra.mxu0 0.0
    %361 = vmatprep.subr.mxu0 0.0
    %362 = vmatpush1.msra.mxu0 0.0
    %363 = vmatprep.mubr.f32.mxu0 0.0
    %364 = vmatmul.mubr.f32.gmra.mrb[0].mxu0 %v294
    %v365 = vpop.f32.mrb[0].mxu0
    %v366 = vadd.f32 %v290, %v365
    %v367 = vpop.f32.mrb[0].mxu0
    %368 = vdwg.mxu0
    %v370 = vsel %vm215, %v177, 0
    %v373 = vsel %vm219, %v213, 0
    %375 = vmatprep.subr.mxu0 0.0
    %376 = vmatpush1.msra.mxu0 %v373
    %377 = vmatprep.subr.mxu0 0.0
    %378 = vmatpush1.msra.mxu0 0.0
    %379 = vmatprep.subr.mxu0 0.0
    %380 = vmatpush1.msra.mxu0 0.0
    %381 = vmatprep.subr.mxu0 0.0
    %382 = vmatpush1.msra.mxu0 0.0
    %383 = vmatprep.subr.mxu0 0.0
    %384 = vmatpush1.msra.mxu0 0.0
    %385 = vmatprep.subr.mxu0 0.0
    %386 = vmatpush1.msra.mxu0 0.0
    %387 = vmatprep.subr.mxu0 0.0
    %388 = vmatpush1.msra.mxu0 0.0
    %389 = vmatprep.subr.mxu0 0.0
    %390 = vmatpush1.msra.mxu0 0.0
    %391 = vmatprep.subr.mxu0 0.0
    %392 = vmatpush1.msra.mxu0 0.0
    %393 = vmatprep.subr.mxu0 0.0
    %394 = vmatpush1.msra.mxu0 0.0
    %395 = vmatprep.subr.mxu0 0.0
    %396 = vmatpush1.msra.mxu0 0.0
    %397 = vmatprep.subr.mxu0 0.0
    %398 = vmatpush1.msra.mxu0 0.0
    %399 = vmatprep.subr.mxu0 0.0
    %400 = vmatpush1.msra.mxu0 0.0
    %401 = vmatprep.subr.mxu0 0.0
    %402 = vmatpush1.msra.mxu0 0.0
    %403 = vmatprep.subr.mxu0 0.0
    %404 = vmatpush1.msra.mxu0 0.0
    %405 = vmatprep.subr.mxu0 0.0
    %406 = vmatpush1.msra.mxu0 0.0
    %407 = vmatprep.subr.mxu0 0.0
    %408 = vmatpush1.msra.mxu0 0.0
    %409 = vmatprep.subr.mxu0 0.0
    %410 = vmatpush1.msra.mxu0 0.0
    %411 = vmatprep.subr.mxu0 0.0
    %412 = vmatpush1.msra.mxu0 0.0
    %413 = vmatprep.subr.mxu0 0.0
    %414 = vmatpush1.msra.mxu0 0.0
    %415 = vmatprep.subr.mxu0 0.0
    %416 = vmatpush1.msra.mxu0 0.0
    %417 = vmatprep.subr.mxu0 0.0
    %418 = vmatpush1.msra.mxu0 0.0
    %419 = vmatprep.subr.mxu0 0.0
    %420 = vmatpush1.msra.mxu0 0.0
    %421 = vmatprep.subr.mxu0 0.0
    %422 = vmatpush1.msra.mxu0 0.0
    %423 = vmatprep.subr.mxu0 0.0
    %424 = vmatpush1.msra.mxu0 0.0
    %425 = vmatprep.subr.mxu0 0.0
    %426 = vmatpush1.msra.mxu0 0.0
    %427 = vmatprep.subr.mxu0 0.0
    %428 = vmatpush1.msra.mxu0 0.0
    %429 = vmatprep.subr.mxu0 0.0
    %430 = vmatpush1.msra.mxu0 0.0
    %431 = vmatprep.subr.mxu0 0.0
    %432 = vmatpush1.msra.mxu0 0.0
    %433 = vmatprep.subr.mxu0 0.0
    %434 = vmatpush1.msra.mxu0 0.0
    %435 = vmatprep.subr.mxu0 0.0
    %436 = vmatpush1.msra.mxu0 0.0
    %437 = vmatprep.subr.mxu0 0.0
    %438 = vmatpush1.msra.mxu0 0.0
    %439 = vmatprep.mubr.f32.mxu0 0.0
    %440 = vmatmul.mubr.f32.gmra.mrb[0].mxu0 %v370
    %v441 = vpop.f32.mrb[0].mxu0
    %v442 = vadd.f32 0.0, %v441
    %v443 = vpop.f32.mrb[0].mxu0
    %444 = vdwg.mxu0
    %v445 = vadd.f32 %v366, %v442
    %v447 = vsel %vm219, %v172, 0
    %449 = vmatprep.subr.mxu0 0.0
    %450 = vmatpush1.msra.mxu0 %v447
    %451 = vmatprep.subr.mxu0 0.0
    %452 = vmatpush1.msra.mxu0 0.0
    %453 = vmatprep.subr.mxu0 0.0
    %454 = vmatpush1.msra.mxu0 0.0
    %455 = vmatprep.subr.mxu0 0.0
    %456 = vmatpush1.msra.mxu0 0.0
    %457 = vmatprep.subr.mxu0 0.0
    %458 = vmatpush1.msra.mxu0 0.0
    %459 = vmatprep.subr.mxu0 0.0
    %460 = vmatpush1.msra.mxu0 0.0
    %461 = vmatprep.subr.mxu0 0.0
    %462 = vmatpush1.msra.mxu0 0.0
    %463 = vmatprep.subr.mxu0 0.0
    %464 = vmatpush1.msra.mxu0 0.0
    %465 = vmatprep.subr.mxu0 0.0
    %466 = vmatpush1.msra.mxu0 0.0
    %467 = vmatprep.subr.mxu0 0.0
    %468 = vmatpush1.msra.mxu0 0.0
    %469 = vmatprep.subr.mxu0 0.0
    %470 = vmatpush1.msra.mxu0 0.0
    %471 = vmatprep.subr.mxu0 0.0
    %472 = vmatpush1.msra.mxu0 0.0
    %473 = vmatprep.subr.mxu0 0.0
    %474 = vmatpush1.msra.mxu0 0.0
    %475 = vmatprep.subr.mxu0 0.0
    %476 = vmatpush1.msra.mxu0 0.0
    %477 = vmatprep.subr.mxu0 0.0
    %478 = vmatpush1.msra.mxu0 0.0
    %479 = vmatprep.subr.mxu0 0.0
    %480 = vmatpush1.msra.mxu0 0.0
    %481 = vmatprep.subr.mxu0 0.0
    %482 = vmatpush1.msra.mxu0 0.0
    %483 = vmatprep.subr.mxu0 0.0
    %484 = vmatpush1.msra.mxu0 0.0
    %485 = vmatprep.subr.mxu0 0.0
    %486 = vmatpush1.msra.mxu0 0.0
    %487 = vmatprep.subr.mxu0 0.0
    %488 = vmatpush1.msra.mxu0 0.0
    %489 = vmatprep.subr.mxu0 0.0
    %490 = vmatpush1.msra.mxu0 0.0
    %491 = vmatprep.subr.mxu0 0.0
    %492 = vmatpush1.msra.mxu0 0.0
    %493 = vmatprep.subr.mxu0 0.0
    %494 = vmatpush1.msra.mxu0 0.0
    %495 = vmatprep.subr.mxu0 0.0
    %496 = vmatpush1.msra.mxu0 0.0
    %497 = vmatprep.subr.mxu0 0.0
    %498 = vmatpush1.msra.mxu0 0.0
    %499 = vmatprep.subr.mxu0 0.0
    %500 = vmatpush1.msra.mxu0 0.0
    %501 = vmatprep.subr.mxu0 0.0
    %502 = vmatpush1.msra.mxu0 0.0
    %503 = vmatprep.subr.mxu0 0.0
    %504 = vmatpush1.msra.mxu0 0.0
    %505 = vmatprep.subr.mxu0 0.0
    %506 = vmatpush1.msra.mxu0 0.0
    %507 = vmatprep.subr.mxu0 0.0
    %508 = vmatpush1.msra.mxu0 0.0
    %509 = vmatprep.subr.mxu0 0.0
    %510 = vmatpush1.msra.mxu0 0.0
    %511 = vmatprep.subr.mxu0 0.0
    %512 = vmatpush1.msra.mxu0 0.0
    %513 = vmatprep.mubr.f32.mxu0 0.0
    %514 = vmatmul.mubr.f32.gmra.mrb[0].mxu0 %v217
    %v515 = vpop.f32.mrb[0].mxu0
    %v516 = vadd.f32 0.0, %v515
    %v517 = vpop.f32.mrb[0].mxu0
    %518 = vdwg.mxu0
    %v520 = vsel %vm219, %v205, 0
    %522 = vmatprep.subr.mxu0 0.0
    %523 = vmatpush1.msra.mxu0 %v520
    %524 = vmatprep.subr.mxu0 0.0
    %525 = vmatpush1.msra.mxu0 0.0
    %526 = vmatprep.subr.mxu0 0.0
    %527 = vmatpush1.msra.mxu0 0.0
    %528 = vmatprep.subr.mxu0 0.0
    %529 = vmatpush1.msra.mxu0 0.0
    %530 = vmatprep.subr.mxu0 0.0
    %531 = vmatpush1.msra.mxu0 0.0
    %532 = vmatprep.subr.mxu0 0.0
    %533 = vmatpush1.msra.mxu0 0.0
    %534 = vmatprep.subr.mxu0 0.0
    %535 = vmatpush1.msra.mxu0 0.0
    %536 = vmatprep.subr.mxu0 0.0
    %537 = vmatpush1.msra.mxu0 0.0
    %538 = vmatprep.subr.mxu0 0.0
    %539 = vmatpush1.msra.mxu0 0.0
    %540 = vmatprep.subr.mxu0 0.0
    %541 = vmatpush1.msra.mxu0 0.0
    %542 = vmatprep.subr.mxu0 0.0
    %543 = vmatpush1.msra.mxu0 0.0
    %544 = vmatprep.subr.mxu0 0.0
    %545 = vmatpush1.msra.mxu0 0.0
    %546 = vmatprep.subr.mxu0 0.0
    %547 = vmatpush1.msra.mxu0 0.0
    %548 = vmatprep.subr.mxu0 0.0
    %549 = vmatpush1.msra.mxu0 0.0
    %550 = vmatprep.subr.mxu0 0.0
    %551 = vmatpush1.msra.mxu0 0.0
    %552 = vmatprep.subr.mxu0 0.0
    %553 = vmatpush1.msra.mxu0 0.0
    %554 = vmatprep.subr.mxu0 0.0
    %555 = vmatpush1.msra.mxu0 0.0
    %556 = vmatprep.subr.mxu0 0.0
    %557 = vmatpush1.msra.mxu0 0.0
    %558 = vmatprep.subr.mxu0 0.0
    %559 = vmatpush1.msra.mxu0 0.0
    %560 = vmatprep.subr.mxu0 0.0
    %561 = vmatpush1.msra.mxu0 0.0
    %562 = vmatprep.subr.mxu0 0.0
    %563 = vmatpush1.msra.mxu0 0.0
    %564 = vmatprep.subr.mxu0 0.0
    %565 = vmatpush1.msra.mxu0 0.0
    %566 = vmatprep.subr.mxu0 0.0
    %567 = vmatpush1.msra.mxu0 0.0
    %568 = vmatprep.subr.mxu0 0.0
    %569 = vmatpush1.msra.mxu0 0.0
    %570 = vmatprep.subr.mxu0 0.0
    %571 = vmatpush1.msra.mxu0 0.0
    %572 = vmatprep.subr.mxu0 0.0
    %573 = vmatpush1.msra.mxu0 0.0
    %574 = vmatprep.subr.mxu0 0.0
    %575 = vmatpush1.msra.mxu0 0.0
    %576 = vmatprep.subr.mxu0 0.0
    %577 = vmatpush1.msra.mxu0 0.0
    %578 = vmatprep.subr.mxu0 0.0
    %579 = vmatpush1.msra.mxu0 0.0
    %580 = vmatprep.subr.mxu0 0.0
    %581 = vmatpush1.msra.mxu0 0.0
    %582 = vmatprep.subr.mxu0 0.0
    %583 = vmatpush1.msra.mxu0 0.0
    %584 = vmatprep.subr.mxu0 0.0
    %585 = vmatpush1.msra.mxu0 0.0
    %586 = vmatprep.mubr.f32.mxu0 0.0
    %587 = vmatmul.mubr.f32.gmra.mrb[0].mxu0 %v294
    %v588 = vpop.f32.mrb[0].mxu0
    %v589 = vadd.f32 %v516, %v588
    %v590 = vpop.f32.mrb[0].mxu0
    %591 = vdwg.mxu0
    %v593 = vsel %vm219, %v214, 0
    %595 = vmatprep.subr.mxu0 0.0
    %596 = vmatpush1.msra.mxu0 %v593
    %597 = vmatprep.subr.mxu0 0.0
    %598 = vmatpush1.msra.mxu0 0.0
    %599 = vmatprep.subr.mxu0 0.0
    %600 = vmatpush1.msra.mxu0 0.0
    %601 = vmatprep.subr.mxu0 0.0
    %602 = vmatpush1.msra.mxu0 0.0
    %603 = vmatprep.subr.mxu0 0.0
    %604 = vmatpush1.msra.mxu0 0.0
    %605 = vmatprep.subr.mxu0 0.0
    %606 = vmatpush1.msra.mxu0 0.0
    %607 = vmatprep.subr.mxu0 0.0
    %608 = vmatpush1.msra.mxu0 0.0
    %609 = vmatprep.subr.mxu0 0.0
    %610 = vmatpush1.msra.mxu0 0.0
    %611 = vmatprep.subr.mxu0 0.0
    %612 = vmatpush1.msra.mxu0 0.0
    %613 = vmatprep.subr.mxu0 0.0
    %614 = vmatpush1.msra.mxu0 0.0
    %615 = vmatprep.subr.mxu0 0.0
    %616 = vmatpush1.msra.mxu0 0.0
    %617 = vmatprep.subr.mxu0 0.0
    %618 = vmatpush1.msra.mxu0 0.0
    %619 = vmatprep.subr.mxu0 0.0
    %620 = vmatpush1.msra.mxu0 0.0
    %621 = vmatprep.subr.mxu0 0.0
    %622 = vmatpush1.msra.mxu0 0.0
    %623 = vmatprep.subr.mxu0 0.0
    %624 = vmatpush1.msra.mxu0 0.0
    %625 = vmatprep.subr.mxu0 0.0
    %626 = vmatpush1.msra.mxu0 0.0
    %627 = vmatprep.subr.mxu0 0.0
    %628 = vmatpush1.msra.mxu0 0.0
    %629 = vmatprep.subr.mxu0 0.0
    %630 = vmatpush1.msra.mxu0 0.0
    %631 = vmatprep.subr.mxu0 0.0
    %632 = vmatpush1.msra.mxu0 0.0
    %633 = vmatprep.subr.mxu0 0.0
    %634 = vmatpush1.msra.mxu0 0.0
    %635 = vmatprep.subr.mxu0 0.0
    %636 = vmatpush1.msra.mxu0 0.0
    %637 = vmatprep.subr.mxu0 0.0
    %638 = vmatpush1.msra.mxu0 0.0
    %639 = vmatprep.subr.mxu0 0.0
    %640 = vmatpush1.msra.mxu0 0.0
    %641 = vmatprep.subr.mxu0 0.0
    %642 = vmatpush1.msra.mxu0 0.0
    %643 = vmatprep.subr.mxu0 0.0
    %644 = vmatpush1.msra.mxu0 0.0
    %645 = vmatprep.subr.mxu0 0.0
    %646 = vmatpush1.msra.mxu0 0.0
    %647 = vmatprep.subr.mxu0 0.0
    %648 = vmatpush1.msra.mxu0 0.0
    %649 = vmatprep.subr.mxu0 0.0
    %650 = vmatpush1.msra.mxu0 0.0
    %651 = vmatprep.subr.mxu0 0.0
    %652 = vmatpush1.msra.mxu0 0.0
    %653 = vmatprep.subr.mxu0 0.0
    %654 = vmatpush1.msra.mxu0 0.0
    %655 = vmatprep.subr.mxu0 0.0
    %656 = vmatpush1.msra.mxu0 0.0
    %657 = vmatprep.subr.mxu0 0.0
    %658 = vmatpush1.msra.mxu0 0.0
    %659 = vmatprep.mubr.f32.mxu0 0.0
    %660 = vmatmul.mubr.f32.gmra.mrb[0].mxu0 %v370
    %v661 = vpop.f32.mrb[0].mxu0
    %v662 = vadd.f32 0.0, %v661
    %v663 = vpop.f32.mrb[0].mxu0
    %664 = vdwg.mxu0
    %v665 = vadd.f32 %v589, %v662
    %vm666 = vcmask 254976
    %v667 = vsel %vm666, %v445, 0.0
    %668 = vadd.xlane.f32.xlu0 %v667
    %v669 = vpop.xlane.xlu0 %668
    %v670 = vsel %vm666, %v665, 0.0
    %671 = vadd.xlane.f32.xlu0 %v670
    %v672 = vpop.xlane.xlu0 %671
    %vm673 = vcmask 1041408
    %v674 = vsel %vm673, %v669, 0.0
    %v675 = vsel %vm673, %v672, 0.0
    %v676 = vadd.f32 %v674, %v675
    %v677 = vmul.f32 %v445, %v445
    %v678 = vmul.f32 %v665, %v665
    %v679 = vsel %vm666, %v677, 0.0
    %680 = vadd.xlane.f32.xlu0 %v679
    %v681 = vpop.xlane.xlu0 %680
    %v682 = vsel %vm666, %v678, 0.0
    %683 = vadd.xlane.f32.xlu0 %v682
    %v684 = vpop.xlane.xlu0 %683
    %v685 = vsel %vm673, %v681, 0.0
    %v686 = vsel %vm673, %v684, 0.0
    %v687 = vadd.f32 %v685, %v686
    %v688 = vrcp.pop 64.0
    %v689 = vmul.f32 %v676, %v688
    %v690 = vmul.f32 %v687, %v688
    %v691 = vmul.f32 %v689, %v689
    %v692 = vsub.f32 %v690, %v691
    %v693 = vadd.f32 %v692, 1e-05
    %v694 = vrsqrt.pop %v693
    %v695 = vmul.f32 %v178, %v694
    %v696 = vmul.f32 %v689, %v695
    %v697 = vsub.f32 %v179, %v696
    %699 = vset.pattern.permute.xlu0 0
    %700 = vperm.xlu0 %699, %v695
    %v701 = vpop.permute.xlu0 %700
    %v703 = vmul.f32 %v445, %v701
    %v704 = vmul.f32 %v665, %v701
    %706 = vset.pattern.permute.xlu0 0
    %707 = vperm.xlu0 %706, %v697
    %v708 = vpop.permute.xlu0 %707
    %v710 = vadd.f32 %v703, %v708
    %v711 = vadd.f32 %v704, %v708
    %v712 = vmax.f32 %v710, 0.0
    %v713 = vmax.f32 %v711, 0.0
    %v714 = vld [vmem:[%s4] sm:$0xff]
    %v715 = vld [vmem:[%s4 + $0x8] sm:$0xff]
    %v716 = vld [vmem:[%s4 + $0x10] sm:$0xff]
    %v717 = vld [vmem:[%s5] sm:$0xff]
    %v718 = vld [vmem:[%s5 + $0x8] sm:$0xff]
    %719 = vrot.lane.b32.xlu0 %v712, 32
    %v720 = vpop.permute.xlu0 %719
    %v721 = vsel %vm182, %v720, %v712
    %722 = vrot.lane.b32.xlu0 %v713, 32
    %v723 = vpop.permute.xlu0 %722
    %v724 = vsel %vm182, %v723, %v713
    %725 = vrot.lane.b32.xlu0 %v721, 32
    %v726 = vpop.permute.xlu0 %725
    %727 = vrot.lane.b32.xlu0 %v724, 32
    %v728 = vpop.permute.xlu0 %727
    %v729 = vsel %vm182, %v726, %v712
    %v730 = vsel %vm182, %v728, %v713
    %733 = vrot.lane.b32.xlu0 %v729, 97
    %v734 = vpop.permute.xlu0 %733
    %735 = vrot.lane.b32.xlu0 %v730, 97
    %v736 = vpop.permute.xlu0 %735
    %v739 = vsel %vm195, %v734, 0.0
    %v740 = vsel %vm195, %v736, 0.0
    %741 = vrot.lane.b32.xlu0 %v729, 127
    %v742 = vpop.permute.xlu0 %741
    %743 = vrot.lane.b32.xlu0 %v730, 127
    %v744 = vpop.permute.xlu0 %743
    %v747 = vsel %vm206, %v742, 0.0
    %v748 = vsel %vm206, %v744, 0.0
    %vm749 = vcmask 15360
    %v751 = vsel %vm749, %v715, 0
    %v754 = vsel %vm673, %v712, 0
    %756 = vmatprep.subr.mxu0 0.0
    %757 = vmatpush1.msra.mxu0 %v754
    %758 = vmatprep.subr.mxu0 0.0
    %759 = vmatpush1.msra.mxu0 0.0
    %760 = vmatprep.subr.mxu0 0.0
    %761 = vmatpush1.msra.mxu0 0.0
    %762 = vmatprep.subr.mxu0 0.0
    %763 = vmatpush1.msra.mxu0 0.0
    %764 = vmatprep.subr.mxu0 0.0
    %765 = vmatpush1.msra.mxu0 0.0
    %766 = vmatprep.subr.mxu0 0.0
    %767 = vmatpush1.msra.mxu0 0.0
    %768 = vmatprep.subr.mxu0 0.0
    %769 = vmatpush1.msra.mxu0 0.0
    %770 = vmatprep.subr.mxu0 0.0
    %771 = vmatpush1.msra.mxu0 0.0
    %772 = vmatprep.subr.mxu0 0.0
    %773 = vmatpush1.msra.mxu0 0.0
    %774 = vmatprep.subr.mxu0 0.0
    %775 = vmatpush1.msra.mxu0 0.0
    %776 = vmatprep.subr.mxu0 0.0
    %777 = vmatpush1.msra.mxu0 0.0
    %778 = vmatprep.subr.mxu0 0.0
    %779 = vmatpush1.msra.mxu0 0.0
    %780 = vmatprep.subr.mxu0 0.0
    %781 = vmatpush1.msra.mxu0 0.0
    %782 = vmatprep.subr.mxu0 0.0
    %783 = vmatpush1.msra.mxu0 0.0
    %784 = vmatprep.subr.mxu0 0.0
    %785 = vmatpush1.msra.mxu0 0.0
    %786 = vmatprep.subr.mxu0 0.0
    %787 = vmatpush1.msra.mxu0 0.0
    %788 = vmatprep.subr.mxu0 0.0
    %789 = vmatpush1.msra.mxu0 0.0
    %790 = vmatprep.subr.mxu0 0.0
    %791 = vmatpush1.msra.mxu0 0.0
    %792 = vmatprep.subr.mxu0 0.0
    %793 = vmatpush1.msra.mxu0 0.0
    %794 = vmatprep.subr.mxu0 0.0
    %795 = vmatpush1.msra.mxu0 0.0
    %796 = vmatprep.subr.mxu0 0.0
    %797 = vmatpush1.msra.mxu0 0.0
    %798 = vmatprep.subr.mxu0 0.0
    %799 = vmatpush1.msra.mxu0 0.0
    %800 = vmatprep.subr.mxu0 0.0
    %801 = vmatpush1.msra.mxu0 0.0
    %802 = vmatprep.subr.mxu0 0.0
    %803 = vmatpush1.msra.mxu0 0.0
    %804 = vmatprep.subr.mxu0 0.0
    %805 = vmatpush1.msra.mxu0 0.0
    %806 = vmatprep.subr.mxu0 0.0
    %807 = vmatpush1.msra.mxu0 0.0
    %808 = vmatprep.subr.mxu0 0.0
    %809 = vmatpush1.msra.mxu0 0.0
    %810 = vmatprep.subr.mxu0 0.0
    %811 = vmatpush1.msra.mxu0 0.0
    %812 = vmatprep.subr.mxu0 0.0
    %813 = vmatpush1.msra.mxu0 0.0
    %814 = vmatprep.subr.mxu0 0.0
    %815 = vmatpush1.msra.mxu0 0.0
    %816 = vmatprep.subr.mxu0 0.0
    %817 = vmatpush1.msra.mxu0 0.0
    %818 = vmatprep.subr.mxu0 0.0
    %819 = vmatpush1.msra.mxu0 0.0
    %820 = vmatprep.mubr.f32.mxu0 0.0
    %821 = vmatmul.mubr.f32.gmra.mrb[0].mxu0 %v751
    %v822 = vpop.f32.mrb[0].mxu0
    %v823 = vadd.f32 0.0, %v822
    %v824 = vpop.f32.mrb[0].mxu0
    %825 = vdwg.mxu0
    %v827 = vsel %vm749, %v714, 0
    %v830 = vsel %vm673, %v739, 0
    %832 = vmatprep.subr.mxu0 0.0
    %833 = vmatpush1.msra.mxu0 %v830
    %834 = vmatprep.subr.mxu0 0.0
    %835 = vmatpush1.msra.mxu0 0.0
    %836 = vmatprep.subr.mxu0 0.0
    %837 = vmatpush1.msra.mxu0 0.0
    %838 = vmatprep.subr.mxu0 0.0
    %839 = vmatpush1.msra.mxu0 0.0
    %840 = vmatprep.subr.mxu0 0.0
    %841 = vmatpush1.msra.mxu0 0.0
    %842 = vmatprep.subr.mxu0 0.0
    %843 = vmatpush1.msra.mxu0 0.0
    %844 = vmatprep.subr.mxu0 0.0
    %845 = vmatpush1.msra.mxu0 0.0
    %846 = vmatprep.subr.mxu0 0.0
    %847 = vmatpush1.msra.mxu0 0.0
    %848 = vmatprep.subr.mxu0 0.0
    %849 = vmatpush1.msra.mxu0 0.0
    %850 = vmatprep.subr.mxu0 0.0
    %851 = vmatpush1.msra.mxu0 0.0
    %852 = vmatprep.subr.mxu0 0.0
    %853 = vmatpush1.msra.mxu0 0.0
    %854 = vmatprep.subr.mxu0 0.0
    %855 = vmatpush1.msra.mxu0 0.0
    %856 = vmatprep.subr.mxu0 0.0
    %857 = vmatpush1.msra.mxu0 0.0
    %858 = vmatprep.subr.mxu0 0.0
    %859 = vmatpush1.msra.mxu0 0.0
    %860 = vmatprep.subr.mxu0 0.0
    %861 = vmatpush1.msra.mxu0 0.0
    %862 = vmatprep.subr.mxu0 0.0
    %863 = vmatpush1.msra.mxu0 0.0
    %864 = vmatprep.subr.mxu0 0.0
    %865 = vmatpush1.msra.mxu0 0.0
    %866 = vmatprep.subr.mxu0 0.0
    %867 = vmatpush1.msra.mxu0 0.0
    %868 = vmatprep.subr.mxu0 0.0
    %869 = vmatpush1.msra.mxu0 0.0
    %870 = vmatprep.subr.mxu0 0.0
    %871 = vmatpush1.msra.mxu0 0.0
    %872 = vmatprep.subr.mxu0 0.0
    %873 = vmatpush1.msra.mxu0 0.0
    %874 = vmatprep.subr.mxu0 0.0
    %875 = vmatpush1.msra.mxu0 0.0
    %876 = vmatprep.subr.mxu0 0.0
    %877 = vmatpush1.msra.mxu0 0.0
    %878 = vmatprep.subr.mxu0 0.0
    %879 = vmatpush1.msra.mxu0 0.0
    %880 = vmatprep.subr.mxu0 0.0
    %881 = vmatpush1.msra.mxu0 0.0
    %882 = vmatprep.subr.mxu0 0.0
    %883 = vmatpush1.msra.mxu0 0.0
    %884 = vmatprep.subr.mxu0 0.0
    %885 = vmatpush1.msra.mxu0 0.0
    %886 = vmatprep.subr.mxu0 0.0
    %887 = vmatpush1.msra.mxu0 0.0
    %888 = vmatprep.subr.mxu0 0.0
    %889 = vmatpush1.msra.mxu0 0.0
    %890 = vmatprep.subr.mxu0 0.0
    %891 = vmatpush1.msra.mxu0 0.0
    %892 = vmatprep.subr.mxu0 0.0
    %893 = vmatpush1.msra.mxu0 0.0
    %894 = vmatprep.subr.mxu0 0.0
    %895 = vmatpush1.msra.mxu0 0.0
    %896 = vmatprep.mubr.f32.mxu0 0.0
    %897 = vmatmul.mubr.f32.gmra.mrb[0].mxu0 %v827
    %v898 = vpop.f32.mrb[0].mxu0
    %v899 = vadd.f32 %v823, %v898
    %v900 = vpop.f32.mrb[0].mxu0
    %901 = vdwg.mxu0
    %v903 = vsel %vm749, %v716, 0
    %v906 = vsel %vm673, %v747, 0
    %908 = vmatprep.subr.mxu0 0.0
    %909 = vmatpush1.msra.mxu0 %v906
    %910 = vmatprep.subr.mxu0 0.0
    %911 = vmatpush1.msra.mxu0 0.0
    %912 = vmatprep.subr.mxu0 0.0
    %913 = vmatpush1.msra.mxu0 0.0
    %914 = vmatprep.subr.mxu0 0.0
    %915 = vmatpush1.msra.mxu0 0.0
    %916 = vmatprep.subr.mxu0 0.0
    %917 = vmatpush1.msra.mxu0 0.0
    %918 = vmatprep.subr.mxu0 0.0
    %919 = vmatpush1.msra.mxu0 0.0
    %920 = vmatprep.subr.mxu0 0.0
    %921 = vmatpush1.msra.mxu0 0.0
    %922 = vmatprep.subr.mxu0 0.0
    %923 = vmatpush1.msra.mxu0 0.0
    %924 = vmatprep.subr.mxu0 0.0
    %925 = vmatpush1.msra.mxu0 0.0
    %926 = vmatprep.subr.mxu0 0.0
    %927 = vmatpush1.msra.mxu0 0.0
    %928 = vmatprep.subr.mxu0 0.0
    %929 = vmatpush1.msra.mxu0 0.0
    %930 = vmatprep.subr.mxu0 0.0
    %931 = vmatpush1.msra.mxu0 0.0
    %932 = vmatprep.subr.mxu0 0.0
    %933 = vmatpush1.msra.mxu0 0.0
    %934 = vmatprep.subr.mxu0 0.0
    %935 = vmatpush1.msra.mxu0 0.0
    %936 = vmatprep.subr.mxu0 0.0
    %937 = vmatpush1.msra.mxu0 0.0
    %938 = vmatprep.subr.mxu0 0.0
    %939 = vmatpush1.msra.mxu0 0.0
    %940 = vmatprep.subr.mxu0 0.0
    %941 = vmatpush1.msra.mxu0 0.0
    %942 = vmatprep.subr.mxu0 0.0
    %943 = vmatpush1.msra.mxu0 0.0
    %944 = vmatprep.subr.mxu0 0.0
    %945 = vmatpush1.msra.mxu0 0.0
    %946 = vmatprep.subr.mxu0 0.0
    %947 = vmatpush1.msra.mxu0 0.0
    %948 = vmatprep.subr.mxu0 0.0
    %949 = vmatpush1.msra.mxu0 0.0
    %950 = vmatprep.subr.mxu0 0.0
    %951 = vmatpush1.msra.mxu0 0.0
    %952 = vmatprep.subr.mxu0 0.0
    %953 = vmatpush1.msra.mxu0 0.0
    %954 = vmatprep.subr.mxu0 0.0
    %955 = vmatpush1.msra.mxu0 0.0
    %956 = vmatprep.subr.mxu0 0.0
    %957 = vmatpush1.msra.mxu0 0.0
    %958 = vmatprep.subr.mxu0 0.0
    %959 = vmatpush1.msra.mxu0 0.0
    %960 = vmatprep.subr.mxu0 0.0
    %961 = vmatpush1.msra.mxu0 0.0
    %962 = vmatprep.subr.mxu0 0.0
    %963 = vmatpush1.msra.mxu0 0.0
    %964 = vmatprep.subr.mxu0 0.0
    %965 = vmatpush1.msra.mxu0 0.0
    %966 = vmatprep.subr.mxu0 0.0
    %967 = vmatpush1.msra.mxu0 0.0
    %968 = vmatprep.subr.mxu0 0.0
    %969 = vmatpush1.msra.mxu0 0.0
    %970 = vmatprep.subr.mxu0 0.0
    %971 = vmatpush1.msra.mxu0 0.0
    %972 = vmatprep.mubr.f32.mxu0 0.0
    %973 = vmatmul.mubr.f32.gmra.mrb[0].mxu0 %v903
    %v974 = vpop.f32.mrb[0].mxu0
    %v975 = vadd.f32 0.0, %v974
    %v976 = vpop.f32.mrb[0].mxu0
    %977 = vdwg.mxu0
    %v978 = vadd.f32 %v899, %v975
    %v980 = vsel %vm673, %v713, 0
    %982 = vmatprep.subr.mxu0 0.0
    %983 = vmatpush1.msra.mxu0 %v980
    %984 = vmatprep.subr.mxu0 0.0
    %985 = vmatpush1.msra.mxu0 0.0
    %986 = vmatprep.subr.mxu0 0.0
    %987 = vmatpush1.msra.mxu0 0.0
    %988 = vmatprep.subr.mxu0 0.0
    %989 = vmatpush1.msra.mxu0 0.0
    %990 = vmatprep.subr.mxu0 0.0
    %991 = vmatpush1.msra.mxu0 0.0
    %992 = vmatprep.subr.mxu0 0.0
    %993 = vmatpush1.msra.mxu0 0.0
    %994 = vmatprep.subr.mxu0 0.0
    %995 = vmatpush1.msra.mxu0 0.0
    %996 = vmatprep.subr.mxu0 0.0
    %997 = vmatpush1.msra.mxu0 0.0
    %998 = vmatprep.subr.mxu0 0.0
    %999 = vmatpush1.msra.mxu0 0.0
    %1000 = vmatprep.subr.mxu0 0.0
    %1001 = vmatpush1.msra.mxu0 0.0
    %1002 = vmatprep.subr.mxu0 0.0
    %1003 = vmatpush1.msra.mxu0 0.0
    %1004 = vmatprep.subr.mxu0 0.0
    %1005 = vmatpush1.msra.mxu0 0.0
    %1006 = vmatprep.subr.mxu0 0.0
    %1007 = vmatpush1.msra.mxu0 0.0
    %1008 = vmatprep.subr.mxu0 0.0
    %1009 = vmatpush1.msra.mxu0 0.0
    %1010 = vmatprep.subr.mxu0 0.0
    %1011 = vmatpush1.msra.mxu0 0.0
    %1012 = vmatprep.subr.mxu0 0.0
    %1013 = vmatpush1.msra.mxu0 0.0
    %1014 = vmatprep.subr.mxu0 0.0
    %1015 = vmatpush1.msra.mxu0 0.0
    %1016 = vmatprep.subr.mxu0 0.0
    %1017 = vmatpush1.msra.mxu0 0.0
    %1018 = vmatprep.subr.mxu0 0.0
    %1019 = vmatpush1.msra.mxu0 0.0
    %1020 = vmatprep.subr.mxu0 0.0
    %1021 = vmatpush1.msra.mxu0 0.0
    %1022 = vmatprep.subr.mxu0 0.0
    %1023 = vmatpush1.msra.mxu0 0.0
    %1024 = vmatprep.subr.mxu0 0.0
    %1025 = vmatpush1.msra.mxu0 0.0
    %1026 = vmatprep.subr.mxu0 0.0
    %1027 = vmatpush1.msra.mxu0 0.0
    %1028 = vmatprep.subr.mxu0 0.0
    %1029 = vmatpush1.msra.mxu0 0.0
    %1030 = vmatprep.subr.mxu0 0.0
    %1031 = vmatpush1.msra.mxu0 0.0
    %1032 = vmatprep.subr.mxu0 0.0
    %1033 = vmatpush1.msra.mxu0 0.0
    %1034 = vmatprep.subr.mxu0 0.0
    %1035 = vmatpush1.msra.mxu0 0.0
    %1036 = vmatprep.subr.mxu0 0.0
    %1037 = vmatpush1.msra.mxu0 0.0
    %1038 = vmatprep.subr.mxu0 0.0
    %1039 = vmatpush1.msra.mxu0 0.0
    %1040 = vmatprep.subr.mxu0 0.0
    %1041 = vmatpush1.msra.mxu0 0.0
    %1042 = vmatprep.subr.mxu0 0.0
    %1043 = vmatpush1.msra.mxu0 0.0
    %1044 = vmatprep.subr.mxu0 0.0
    %1045 = vmatpush1.msra.mxu0 0.0
    %1046 = vmatprep.mubr.f32.mxu0 0.0
    %1047 = vmatmul.mubr.f32.gmra.mrb[0].mxu0 %v751
    %v1048 = vpop.f32.mrb[0].mxu0
    %v1049 = vadd.f32 0.0, %v1048
    %v1050 = vpop.f32.mrb[0].mxu0
    %1051 = vdwg.mxu0
    %v1053 = vsel %vm673, %v740, 0
    %1055 = vmatprep.subr.mxu0 0.0
    %1056 = vmatpush1.msra.mxu0 %v1053
    %1057 = vmatprep.subr.mxu0 0.0
    %1058 = vmatpush1.msra.mxu0 0.0
    %1059 = vmatprep.subr.mxu0 0.0
    %1060 = vmatpush1.msra.mxu0 0.0
    %1061 = vmatprep.subr.mxu0 0.0
    %1062 = vmatpush1.msra.mxu0 0.0
    %1063 = vmatprep.subr.mxu0 0.0
    %1064 = vmatpush1.msra.mxu0 0.0
    %1065 = vmatprep.subr.mxu0 0.0
    %1066 = vmatpush1.msra.mxu0 0.0
    %1067 = vmatprep.subr.mxu0 0.0
    %1068 = vmatpush1.msra.mxu0 0.0
    %1069 = vmatprep.subr.mxu0 0.0
    %1070 = vmatpush1.msra.mxu0 0.0
    %1071 = vmatprep.subr.mxu0 0.0
    %1072 = vmatpush1.msra.mxu0 0.0
    %1073 = vmatprep.subr.mxu0 0.0
    %1074 = vmatpush1.msra.mxu0 0.0
    %1075 = vmatprep.subr.mxu0 0.0
    %1076 = vmatpush1.msra.mxu0 0.0
    %1077 = vmatprep.subr.mxu0 0.0
    %1078 = vmatpush1.msra.mxu0 0.0
    %1079 = vmatprep.subr.mxu0 0.0
    %1080 = vmatpush1.msra.mxu0 0.0
    %1081 = vmatprep.subr.mxu0 0.0
    %1082 = vmatpush1.msra.mxu0 0.0
    %1083 = vmatprep.subr.mxu0 0.0
    %1084 = vmatpush1.msra.mxu0 0.0
    %1085 = vmatprep.subr.mxu0 0.0
    %1086 = vmatpush1.msra.mxu0 0.0
    %1087 = vmatprep.subr.mxu0 0.0
    %1088 = vmatpush1.msra.mxu0 0.0
    %1089 = vmatprep.subr.mxu0 0.0
    %1090 = vmatpush1.msra.mxu0 0.0
    %1091 = vmatprep.subr.mxu0 0.0
    %1092 = vmatpush1.msra.mxu0 0.0
    %1093 = vmatprep.subr.mxu0 0.0
    %1094 = vmatpush1.msra.mxu0 0.0
    %1095 = vmatprep.subr.mxu0 0.0
    %1096 = vmatpush1.msra.mxu0 0.0
    %1097 = vmatprep.subr.mxu0 0.0
    %1098 = vmatpush1.msra.mxu0 0.0
    %1099 = vmatprep.subr.mxu0 0.0
    %1100 = vmatpush1.msra.mxu0 0.0
    %1101 = vmatprep.subr.mxu0 0.0
    %1102 = vmatpush1.msra.mxu0 0.0
    %1103 = vmatprep.subr.mxu0 0.0
    %1104 = vmatpush1.msra.mxu0 0.0
    %1105 = vmatprep.subr.mxu0 0.0
    %1106 = vmatpush1.msra.mxu0 0.0
    %1107 = vmatprep.subr.mxu0 0.0
    %1108 = vmatpush1.msra.mxu0 0.0
    %1109 = vmatprep.subr.mxu0 0.0
    %1110 = vmatpush1.msra.mxu0 0.0
    %1111 = vmatprep.subr.mxu0 0.0
    %1112 = vmatpush1.msra.mxu0 0.0
    %1113 = vmatprep.subr.mxu0 0.0
    %1114 = vmatpush1.msra.mxu0 0.0
    %1115 = vmatprep.subr.mxu0 0.0
    %1116 = vmatpush1.msra.mxu0 0.0
    %1117 = vmatprep.subr.mxu0 0.0
    %1118 = vmatpush1.msra.mxu0 0.0
    %1119 = vmatprep.mubr.f32.mxu0 0.0
    %1120 = vmatmul.mubr.f32.gmra.mrb[0].mxu0 %v827
    %v1121 = vpop.f32.mrb[0].mxu0
    %v1122 = vadd.f32 %v1049, %v1121
    %v1123 = vpop.f32.mrb[0].mxu0
    %1124 = vdwg.mxu0
    %v1126 = vsel %vm673, %v748, 0
    %1128 = vmatprep.subr.mxu0 0.0
    %1129 = vmatpush1.msra.mxu0 %v1126
    %1130 = vmatprep.subr.mxu0 0.0
    %1131 = vmatpush1.msra.mxu0 0.0
    %1132 = vmatprep.subr.mxu0 0.0
    %1133 = vmatpush1.msra.mxu0 0.0
    %1134 = vmatprep.subr.mxu0 0.0
    %1135 = vmatpush1.msra.mxu0 0.0
    %1136 = vmatprep.subr.mxu0 0.0
    %1137 = vmatpush1.msra.mxu0 0.0
    %1138 = vmatprep.subr.mxu0 0.0
    %1139 = vmatpush1.msra.mxu0 0.0
    %1140 = vmatprep.subr.mxu0 0.0
    %1141 = vmatpush1.msra.mxu0 0.0
    %1142 = vmatprep.subr.mxu0 0.0
    %1143 = vmatpush1.msra.mxu0 0.0
    %1144 = vmatprep.subr.mxu0 0.0
    %1145 = vmatpush1.msra.mxu0 0.0
    %1146 = vmatprep.subr.mxu0 0.0
    %1147 = vmatpush1.msra.mxu0 0.0
    %1148 = vmatprep.subr.mxu0 0.0
    %1149 = vmatpush1.msra.mxu0 0.0
    %1150 = vmatprep.subr.mxu0 0.0
    %1151 = vmatpush1.msra.mxu0 0.0
    %1152 = vmatprep.subr.mxu0 0.0
    %1153 = vmatpush1.msra.mxu0 0.0
    %1154 = vmatprep.subr.mxu0 0.0
    %1155 = vmatpush1.msra.mxu0 0.0
    %1156 = vmatprep.subr.mxu0 0.0
    %1157 = vmatpush1.msra.mxu0 0.0
    %1158 = vmatprep.subr.mxu0 0.0
    %1159 = vmatpush1.msra.mxu0 0.0
    %1160 = vmatprep.subr.mxu0 0.0
    %1161 = vmatpush1.msra.mxu0 0.0
    %1162 = vmatprep.subr.mxu0 0.0
    %1163 = vmatpush1.msra.mxu0 0.0
    %1164 = vmatprep.subr.mxu0 0.0
    %1165 = vmatpush1.msra.mxu0 0.0
    %1166 = vmatprep.subr.mxu0 0.0
    %1167 = vmatpush1.msra.mxu0 0.0
    %1168 = vmatprep.subr.mxu0 0.0
    %1169 = vmatpush1.msra.mxu0 0.0
    %1170 = vmatprep.subr.mxu0 0.0
    %1171 = vmatpush1.msra.mxu0 0.0
    %1172 = vmatprep.subr.mxu0 0.0
    %1173 = vmatpush1.msra.mxu0 0.0
    %1174 = vmatprep.subr.mxu0 0.0
    %1175 = vmatpush1.msra.mxu0 0.0
    %1176 = vmatprep.subr.mxu0 0.0
    %1177 = vmatpush1.msra.mxu0 0.0
    %1178 = vmatprep.subr.mxu0 0.0
    %1179 = vmatpush1.msra.mxu0 0.0
    %1180 = vmatprep.subr.mxu0 0.0
    %1181 = vmatpush1.msra.mxu0 0.0
    %1182 = vmatprep.subr.mxu0 0.0
    %1183 = vmatpush1.msra.mxu0 0.0
    %1184 = vmatprep.subr.mxu0 0.0
    %1185 = vmatpush1.msra.mxu0 0.0
    %1186 = vmatprep.subr.mxu0 0.0
    %1187 = vmatpush1.msra.mxu0 0.0
    %1188 = vmatprep.subr.mxu0 0.0
    %1189 = vmatpush1.msra.mxu0 0.0
    %1190 = vmatprep.subr.mxu0 0.0
    %1191 = vmatpush1.msra.mxu0 0.0
    %1192 = vmatprep.mubr.f32.mxu0 0.0
    %1193 = vmatmul.mubr.f32.gmra.mrb[0].mxu0 %v903
    %v1194 = vpop.f32.mrb[0].mxu0
    %v1195 = vadd.f32 0.0, %v1194
    %v1196 = vpop.f32.mrb[0].mxu0
    %1197 = vdwg.mxu0
    %v1198 = vadd.f32 %v1122, %v1195
    %vm1199 = vcmask 261120
    %v1200 = vsel %vm1199, %v978, 0.0
    %1201 = vadd.xlane.f32.xlu0 %v1200
    %v1202 = vpop.xlane.xlu0 %1201
    %v1203 = vsel %vm1199, %v1198, 0.0
    %1204 = vadd.xlane.f32.xlu0 %v1203
    %v1205 = vpop.xlane.xlu0 %1204
    %v1206 = vadd.f32 %v1202, %v1205
    %v1207 = vmul.f32 %v978, %v978
    %v1208 = vmul.f32 %v1198, %v1198
    %v1209 = vsel %vm1199, %v1207, 0.0
    %1210 = vadd.xlane.f32.xlu0 %v1209
    %v1211 = vpop.xlane.xlu0 %1210
    %v1212 = vsel %vm1199, %v1208, 0.0
    %1213 = vadd.xlane.f32.xlu0 %v1212
    %v1214 = vpop.xlane.xlu0 %1213
    %v1215 = vadd.f32 %v1211, %v1214
    %v1216 = vmul.f32 %v1206, %v688
    %v1217 = vmul.f32 %v1215, %v688
    %v1218 = vmul.f32 %v1216, %v1216
    %v1219 = vsub.f32 %v1217, %v1218
    %v1220 = vadd.f32 %v1219, 1e-05
    %v1221 = vrsqrt.pop %v1220
    %v1222 = vmul.f32 %v717, %v1221
    %v1223 = vmul.f32 %v1216, %v1222
    %v1224 = vsub.f32 %v718, %v1223
    %1226 = vset.pattern.permute.xlu0 0
    %1227 = vperm.xlu0 %1226, %v1222
    %v1228 = vpop.permute.xlu0 %1227
    %v1230 = vmul.f32 %v978, %v1228
    %v1231 = vmul.f32 %v1198, %v1228
    %1233 = vset.pattern.permute.xlu0 0
    %1234 = vperm.xlu0 %1233, %v1224
    %v1235 = vpop.permute.xlu0 %1234
    %v1237 = vadd.f32 %v1230, %v1235
    %v1238 = vadd.f32 %v1231, %v1235
    %v1239 = vmax.f32 %v1237, 0.0
    %v1240 = vmax.f32 %v1238, 0.0
    %1241 = vst.msk [vmem:[#allocation2] sm:$0xff] %vm1199, %v1239
    %1242 = vst.msk [vmem:[#allocation2 + $0x8] sm:$0xff] %vm1199, %v1240
    // Predicated region
    $region26: #{tpu_custom_call.1} parent=1 // pred_check
      _
    $region27: #{tpu_custom_call.1} parent=1 // pred_check_branch
      %1244 = sbr.rel (0) target = $region29
    $region28: #{tpu_custom_call.1} parent=1 // pred_region
      %s1246 = ssub.s32 256, 256
      %1247 = vsyncadd [#allocation3], %s1246
      %s1248 = sshll.u32 [#allocation2], 4
      %s1249 = int_to_ptr.vmem [resolvable:$true] %s1248
      %1254 = dma.vmem_to_hbm [thread:$0]  %s1249, 256, %s6, [#allocation3], 128, 128, 8
    $region29: #{tpu_custom_call.1} parent=1 // pred_fallthru
      _
    // Predicated region
    $region30: #{tpu_custom_call.1} parent=1 // pred_check
      _
    $region31: #{tpu_custom_call.1} parent=1 // pred_check_branch
      %1256 = sbr.rel (0) target = $region33
    $region32: #{tpu_custom_call.1} parent=1 // pred_region
      %1257 = dma.done [#allocation3], 256
    $region33: #{tpu_custom_call.1} parent=1 // pred_fallthru
      _
    %1258 = vsyncpa [#allocation3], 1

</llo_original>
